<compile_context>
chip_gen: v7x
topology: tpu7x:2x2x1
jax: 0.10.0
libtpu: 0.0.40
codegen_flags: <defaults>
</compile_context>

<pallas_src>
import math
from functools import partial

import jax
import jax.numpy as jnp
from jax.experimental import pallas as pl
from jax.experimental.pallas import tpu as pltpu


def _softmax_last(x, *, approx):
    """Row softmax over the last axis; denominator reciprocal on the EUP approx
    path in fast mode, exact (1/x) in f32 mode."""
    m = jnp.max(x, axis=-1, keepdims=True)
    e = jnp.exp(x - m)
    s = jnp.sum(e, axis=-1, keepdims=True)
    return e * pl.reciprocal(s, approx=approx)


def smfe_kernel(l_ref, x_ref, ren_ref, ts_ref, *rest, n_head, causal, approx):
    if causal:
        (wqkv_ref, bqkv_ref, wo_ref, bo_ref, w1_ref, b1_ref,
         ln_g_ref, ln_b_ref, o_ref) = rest
        mask_ref = None
    else:
        (mask_ref, wqkv_ref, bqkv_ref, wo_ref, bo_ref, w1_ref, b1_ref,
         ln_g_ref, ln_b_ref, o_ref) = rest

    Bb, S, D = x_ref.shape
    hd = D // n_head
    inv_sqrt_hd = 1.0 / math.sqrt(hd)
    neg = jnp.float32(-1e9)
    cdt = wqkv_ref.dtype              # MXU operand dtype (bf16 fast / f32 exact)

    l = l_ref[0]

    # ---- mask (True = masked) ------------------------------------------------
    if causal:
        # structural causal mask generated in-kernel: no (B,S,S) HBM stream
        row = jax.lax.broadcasted_iota(jnp.int32, (Bb, S, S), 1)
        col = jax.lax.broadcasted_iota(jnp.int32, (Bb, S, S), 2)
        maskb = col > row
    else:
        maskb = mask_ref[...] > 0

    # ---- fused Q/K/V projection: one (Bb*S, D) @ (D, 3D) MXU launch ----------
    x = x_ref[...].reshape(Bb * S, D).astype(cdt)
    qkv = jnp.dot(x, wqkv_ref[...], preferred_element_type=jnp.float32)
    qkv = qkv + bqkv_ref[...]                            # (Bb*S, 3D) f32
    q = qkv[:, :D].reshape(Bb, S, D).astype(cdt)
    # Hoisted single full-D transpose of K (one XLU pass instead of per-head).
    kT = jnp.swapaxes(qkv[:, D:2 * D].reshape(Bb, S, D).astype(cdt), 1, 2)
    v = qkv[:, 2 * D:].reshape(Bb, S, D).astype(cdt)

    # ---- memory-attention branch (head independent): mem_attn @ V ONCE ------
    ren = ren_ref[...].astype(jnp.float32)
    ts = ts_ref[...].astype(jnp.float32)
    ren_feat = jnp.where(maskb, neg, jnp.log10(ren + 1.0))
    tstamp = jnp.where(maskb, neg, jnp.exp(-jnp.abs(ts)))
    mem_attn = _softmax_last(tstamp + ren_feat, approx=approx)      # (Bb,S,S) f32
    mem_ctx = jnp.einsum("bqk,bkd->bqd", mem_attn.astype(cdt), v,
                         preferred_element_type=jnp.float32)        # (Bb,S,D) f32

    # ---- per-head scaled dot-product attention (no blend inside the loop) ---
    ctx_heads = []
    for h in range(n_head):
        sl = slice(h * hd, (h + 1) * hd)
        s = jnp.einsum("bqd,bdk->bqk", q[:, :, sl], kT[:, sl, :],
                       preferred_element_type=jnp.float32) * inv_sqrt_hd
        s = jnp.where(maskb, neg, s)
        p = _softmax_last(s, approx=approx)
        ctx_heads.append(
            jnp.einsum("bqk,bkd->bqd", p.astype(cdt), v[:, :, sl],
                       preferred_element_type=jnp.float32))         # (Bb,S,hd)
    score_ctx = jnp.concatenate(ctx_heads, axis=-1)                 # (Bb,S,D) f32

    # Single (Bb,S,D) blend instead of n_head (Bb,S,S) blends.
    attn = ((1.0 - l) * score_ctx + l * mem_ctx).reshape(Bb * S, D)

    # ---- lin_out projection + residual lin_out1 (dropout = identity, eval) --
    out = jnp.dot(attn.astype(cdt), wo_ref[...],
                  preferred_element_type=jnp.float32) + bo_ref[...]
    out = out + (jnp.dot(out.astype(cdt), w1_ref[...],
                         preferred_element_type=jnp.float32) + b1_ref[...])

    # ---- LayerNorm over the feature dim --------------------------------------
    mu = jnp.mean(out, axis=-1, keepdims=True)
    var = jnp.mean((out - mu) ** 2, axis=-1, keepdims=True)
    out = (out - mu) * jax.lax.rsqrt(var + 1e-5)
    out = out * ln_g_ref[...] + ln_b_ref[...]

    o_ref[...] = out.reshape(Bb, S, D).astype(o_ref.dtype)


def _vmem_limit_bytes():
    """Generation-aware VMEM limit: leave headroom on v7x's 64 MiB/core, use
    most of v5e/v6e's 128 MiB."""
    try:
        cap = pltpu.get_tpu_info().vmem_capacity_bytes
    except Exception:           # non-TPU tracing / older attribute name
        cap = 128 * 1024 * 1024
    if cap <= 64 * 1024 * 1024:
        return 40 * 1024 * 1024
    return 104 * 1024 * 1024


def _pick_block_b(batch, seq, feat, *, aux_bytes, n_aux, vmem_budget):
    """Batch elements per grid step.

    Preferences, in order:
      1. divides the batch;
      2. per-step streamed footprint (double-buffered aux streams + x + out)
         fits the VMEM budget;
      3. grid has >= 2 steps when the batch allows it (v7x has 2 TensorCores
         and shards a 'parallel' grid axis across them);
      4. smallest Bb with Bb*seq >= 256 (fill the MXU M dimension), otherwise
         the largest candidate that fits.
    """
    divisors = [d for d in range(1, batch + 1) if batch % d == 0]

    def footprint(bb):
        aux = n_aux * bb * seq * seq * aux_bytes
        seq_io = 2 * bb * seq * feat * 4       # x tile + output tile (f32 worst case)
        return 2 * (aux + seq_io)              # double-buffered streams

    fitting = [d for d in divisors if footprint(d) <= vmem_budget] or [1]
    multi = [d for d in fitting if batch // d >= 2]
    cands = multi if multi else fitting
    filled = [d for d in cands if d * seq >= 256]
    return min(filled) if filled else max(cands)


def smfe_forward(params, inputs, ren_mat, timestamp, mask, *, n_head,
                 compute_dtype=jnp.bfloat16, out_dtype=None, block_b=None,
                 causal_mask=False):
    """inputs: (B,S,D); ren_mat/timestamp: (B,S,S); mask: (B,S,S) {0,1} float.

    compute_dtype : MXU operand dtype (and dtype the (B,S,S) auxiliaries are
                    streamed in).  Accumulation / softmax / LayerNorm stay f32.
    out_dtype     : output dtype (default: inputs.dtype).  bf16 halves writeback.
    causal_mask   : if True, the mask argument is assumed to be the strict
                    upper-triangular "future" mask and is generated in-kernel
                    (the (B,S,S) mask stream is not read at all).
    """
    B, S, D = inputs.shape
    assert D % n_head == 0
    cdt = jnp.dtype(compute_dtype)
    exact = cdt == jnp.dtype(jnp.float32)
    out_dt = jnp.dtype(out_dtype) if out_dtype is not None else inputs.dtype

    # The (B,S,S) streams dominate HBM traffic; stream them narrow in bf16 mode
    # (cast back to f32 inside the kernel before exp/log10/softmax).
    aux_dt = jnp.float32 if exact else jnp.bfloat16
    n_aux = 2 if causal_mask else 3
    vmem_limit = _vmem_limit_bytes()

    Bb = (_pick_block_b(B, S, D, aux_bytes=jnp.dtype(aux_dt).itemsize,
                        n_aux=n_aux, vmem_budget=vmem_limit // 2)
          if block_b is None else block_b)
    assert B % Bb == 0

    # Host-side fusion of the three projection weights into one (D, 3D) matmul.
    # Matmul weights pre-cast to the MXU operand dtype; biases / LN params stay
    # f32 (added to the f32 accumulator).
    w_qkv = jnp.concatenate(
        [params["wq"], params["wk"], params["wv"]], axis=1).astype(cdt)
    b_qkv = jnp.concatenate(
        [params["bq"], params["bk"], params["bv"]], axis=1).astype(jnp.float32)
    wo = params["wo"].astype(cdt)
    w1 = params["w1"].astype(cdt)

    ren = ren_mat.astype(aux_dt)
    ts = timestamp.astype(aux_dt)

    # Grid-invariant parameters: single-buffered (no point double-buffering
    # blocks whose index_map never changes).
    single = pl.Buffered(1)
    seq_spec = pl.BlockSpec((Bb, S, D), lambda i: (i, 0, 0))
    sq_spec = pl.BlockSpec((Bb, S, S), lambda i: (i, 0, 0))
    wqkv_spec = pl.BlockSpec((D, 3 * D), lambda i: (0, 0), pipeline_mode=single)
    bqkv_spec = pl.BlockSpec((1, 3 * D), lambda i: (0, 0), pipeline_mode=single)
    mat_spec = pl.BlockSpec((D, D), lambda i: (0, 0), pipeline_mode=single)
    vec_spec = pl.BlockSpec((1, D), lambda i: (0, 0), pipeline_mode=single)

    in_specs = [pl.BlockSpec(memory_space=pltpu.MemorySpace.SMEM),   # l1 scalar
                seq_spec, sq_spec, sq_spec]                          # x, ren, ts
    args = [params["l1"], inputs, ren, ts]
    if not causal_mask:
        in_specs.append(sq_spec)
        args.append(mask.astype(aux_dt))
    in_specs += [wqkv_spec, bqkv_spec,      # fused Wqkv, bqkv
                 mat_spec, vec_spec,        # Wo, bo
                 mat_spec, vec_spec,        # W1, b1
                 vec_spec, vec_spec]        # ln_gamma, ln_beta
    args += [w_qkv, b_qkv, wo, params["bo"], w1, params["b1"],
             params["ln_g"], params["ln_b"]]

    return pl.pallas_call(
        partial(smfe_kernel, n_head=n_head, causal=causal_mask,
                approx=not exact),
        out_shape=jax.ShapeDtypeStruct((B, S, D), out_dt),
        grid=(B // Bb,),
        in_specs=in_specs,
        out_specs=seq_spec,
        compiler_params=pltpu.CompilerParams(
            dimension_semantics=("parallel",),
            vmem_limit_bytes=vmem_limit),
    )(*args)


def smfe_reference(params, inputs, ren_mat, timestamp, mask, *, n_head):
    """Pure-JAX mirror of the PyTorch module's exact (f32) forward."""
    B, S, D = inputs.shape
    hd = D // n_head
    l = params["l1"][0]
    neg = jnp.float32(-1e9)
    maskb = mask > 0

    def lin(x, w, b):
        return jnp.einsum("bsd,de->bse", x, w,
                          preferred_element_type=jnp.float32) + b

    q = lin(inputs, params["wq"], params["bq"]).reshape(B, S, n_head, hd).transpose(0, 2, 1, 3)
    k = lin(inputs, params["wk"], params["bk"]).reshape(B, S, n_head, hd).transpose(0, 2, 1, 3)
    v = lin(inputs, params["wv"], params["bv"]).reshape(B, S, n_head, hd).transpose(0, 2, 1, 3)

    scores = jnp.einsum("bhqd,bhkd->bhqk", q, k,
                        preferred_element_type=jnp.float32) / math.sqrt(hd)
    scores = jnp.where(maskb[:, None], neg, scores)
    p = jax.nn.softmax(scores, axis=-1)

    ren_feat = jnp.where(maskb, neg, jnp.log10(ren_mat + 1.0))
    tstamp = jnp.where(maskb, neg, jnp.exp(-jnp.abs(timestamp)))
    mem = jax.nn.softmax(tstamp + ren_feat, axis=-1)[:, None]
    prob = (1.0 - l) * p + l * mem

    out = jnp.einsum("bhqk,bhkd->bhqd", prob, v,
                     preferred_element_type=jnp.float32)
    out = out.transpose(0, 2, 1, 3).reshape(B, S, D)
    out = lin(out, params["wo"], params["bo"])
    out = out + lin(out, params["w1"], params["b1"])
    mu = jnp.mean(out, axis=-1, keepdims=True)
    var = jnp.mean((out - mu) ** 2, axis=-1, keepdims=True)
    out = (out - mu) * jax.lax.rsqrt(var + 1e-5)
    return out * params["ln_g"][0] + params["ln_b"][0]


def init_params(key, in_dim):
    ks = jax.random.split(key, 10)
    scale = 0.1

    def w(k):
        return (scale * jax.random.normal(k, (in_dim, in_dim))).astype(jnp.float32)

    def b(k):
        return (scale * jax.random.normal(k, (1, in_dim))).astype(jnp.float32)

    return {
        "wq": w(ks[0]), "bq": b(ks[1]),
        "wk": w(ks[2]), "bk": b(ks[3]),
        "wv": w(ks[4]), "bv": b(ks[5]),
        "wo": w(ks[6]), "bo": b(ks[7]),
        "w1": w(ks[8]), "b1": b(ks[9]),
        "ln_g": jnp.ones((1, in_dim), jnp.float32),
        "ln_b": jnp.zeros((1, in_dim), jnp.float32),
        "l1": jnp.array([0.3], jnp.float32),
        # `gammas` exists in the module but never affects the output
        # (softplus(gamma) is computed then unused inside attention()).
    }


if __name__ == "__main__":
    B, S, D, H = 2, 8, 32, 4     # batch, seq, in_dim, n_head (in_dim % n_head == 0)
    key = jax.random.PRNGKey(0)
    kp, kx, kr, kt = jax.random.split(key, 4)

    params = init_params(kp, D)
    inputs = jax.random.normal(kx, (B, S, D), jnp.float32)
    ren_mat = jax.random.uniform(kr, (B, S, S), jnp.float32, 0.0, 5.0)
    timestamp = jax.random.normal(kt, (B, S, S), jnp.float32) * 3.0
    # causal-style boolean mask (True = masked future positions), passed as float
    mask = jnp.triu(jnp.ones((S, S), jnp.float32), k=1)[None].repeat(B, axis=0)

    ref = smfe_reference(params, inputs, ren_mat, timestamp, mask, n_head=H)

    # --- exact-semantics path (f32 MXU operands, streamed mask) --------------
    out_f32 = smfe_forward(params, inputs, ren_mat, timestamp, mask,
                           n_head=H, compute_dtype=jnp.float32)
    out_f32 = jax.block_until_ready(out_f32)
    assert out_f32.shape == (B, S, D)
    assert jnp.allclose(out_f32, ref, rtol=1e-4, atol=1e-4), \
        "f32 kernel mismatch vs JAX reference"

    # --- exact path with the structural (causal) mask generated in-kernel ----
    out_causal = smfe_forward(params, inputs, ren_mat, timestamp, mask,
                              n_head=H, compute_dtype=jnp.float32,
                              causal_mask=True)
    out_causal = jax.block_until_ready(out_causal)
    assert jnp.allclose(out_causal, ref, rtol=1e-4, atol=1e-4), \
        "in-kernel causal-mask path mismatch vs JAX reference"

    # --- fast path: bf16 MXU operands + bf16 aux streams, bf16 output,
    #     in-kernel causal mask, f32 accumulation -----------------------------
    out_bf16 = smfe_forward(params, inputs, ren_mat, timestamp, mask,
                            n_head=H, compute_dtype=jnp.bfloat16,
                            out_dtype=jnp.bfloat16, causal_mask=True)
    out_bf16 = jax.block_until_ready(out_bf16)
    assert jnp.allclose(out_bf16.astype(jnp.float32), ref,
                        rtol=5e-2, atol=5e-2), \
        "bf16 kernel drifted too far from f32 semantics"

    print("KERNEL_OK")
</pallas_src>

<mosaic_0001>
module attributes {stable_mosaic.version = 11 : i64} {
  func.func @smfe_kernel(%arg0: i32, %arg1: memref<1xf32, #tpu.memory_space<smem>>, %arg2: memref<1x8x32xf32, #tpu.memory_space<vmem>>, %arg3: memref<1x8x8xf32, #tpu.memory_space<vmem>>, %arg4: memref<1x8x8xf32, #tpu.memory_space<vmem>>, %arg5: memref<1x8x8xf32, #tpu.memory_space<vmem>>, %arg6: memref<32x96xf32, #tpu.memory_space<vmem>>, %arg7: memref<1x96xf32, #tpu.memory_space<vmem>>, %arg8: memref<32x32xf32, #tpu.memory_space<vmem>>, %arg9: memref<1x32xf32, #tpu.memory_space<vmem>>, %arg10: memref<32x32xf32, #tpu.memory_space<vmem>>, %arg11: memref<1x32xf32, #tpu.memory_space<vmem>>, %arg12: memref<1x32xf32, #tpu.memory_space<vmem>>, %arg13: memref<1x32xf32, #tpu.memory_space<vmem>>, %arg14: memref<1x8x32xf32, #tpu.memory_space<vmem>>) attributes {dimension_semantics = [#tpu.dimension_semantics<parallel>], iteration_bounds = array<i64: 2>, scalar_prefetch = 0 : i64, scratch_operands = 0 : i64, tpu.core_type = #tpu.core_type<tc>, window_params = [{transform_indices = @transform_0, window_bounds = array<i64: 1>}, {transform_indices = @transform_1, window_bounds = array<i64: 1, 8, 32>}, {transform_indices = @transform_2, window_bounds = array<i64: 1, 8, 8>}, {transform_indices = @transform_3, window_bounds = array<i64: 1, 8, 8>}, {transform_indices = @transform_4, window_bounds = array<i64: 1, 8, 8>}, {pipeline_mode = #tpu.pipeline_mode<synchronous>, transform_indices = @transform_5, window_bounds = array<i64: 32, 96>}, {pipeline_mode = #tpu.pipeline_mode<synchronous>, transform_indices = @transform_6, window_bounds = array<i64: 1, 96>}, {pipeline_mode = #tpu.pipeline_mode<synchronous>, transform_indices = @transform_7, window_bounds = array<i64: 32, 32>}, {pipeline_mode = #tpu.pipeline_mode<synchronous>, transform_indices = @transform_8, window_bounds = array<i64: 1, 32>}, {pipeline_mode = #tpu.pipeline_mode<synchronous>, transform_indices = @transform_9, window_bounds = array<i64: 32, 32>}, {pipeline_mode = #tpu.pipeline_mode<synchronous>, transform_indices = @transform_10, window_bounds = array<i64: 1, 32>}, {pipeline_mode = #tpu.pipeline_mode<synchronous>, transform_indices = @transform_11, window_bounds = array<i64: 1, 32>}, {pipeline_mode = #tpu.pipeline_mode<synchronous>, transform_indices = @transform_12, window_bounds = array<i64: 1, 32>}, {transform_indices = @transform_13, window_bounds = array<i64: 1, 8, 32>}]} {
    %c0 = arith.constant 0 : index
    %0 = memref.load %arg1[%c0] : memref<1xf32, #tpu.memory_space<smem>>
    %c0_0 = arith.constant 0 : index
    %c0_1 = arith.constant 0 : index
    %c0_2 = arith.constant 0 : index
    %1 = vector.load %arg5[%c0_0, %c0_1, %c0_2] : memref<1x8x8xf32, #tpu.memory_space<vmem>>, vector<1x8x8xf32>
    %cst = arith.constant 0.000000e+00 : f32
    %2 = vector.broadcast %cst : f32 to vector<1x8x8xf32>
    %3 = arith.cmpf ogt, %1, %2 : vector<1x8x8xf32>
    %c0_3 = arith.constant 0 : index
    %c0_4 = arith.constant 0 : index
    %c0_5 = arith.constant 0 : index
    %4 = vector.load %arg2[%c0_3, %c0_4, %c0_5] : memref<1x8x32xf32, #tpu.memory_space<vmem>>, vector<1x8x32xf32>
    %5 = vector.shape_cast %4 : vector<1x8x32xf32> to vector<8x32xf32>
    %c0_6 = arith.constant 0 : index
    %c0_7 = arith.constant 0 : index
    %6 = vector.load %arg6[%c0_6, %c0_7] : memref<32x96xf32, #tpu.memory_space<vmem>>, vector<32x96xf32>
    %cst_8 = arith.constant dense<0.000000e+00> : vector<8x96xf32>
    %7 = tpu.matmul %5, %6, %cst_8 {dimension_numbers = #tpu.dot_dimension_numbers<[1], [0], [0], [1], [0, 0, 1, 1], [], []>} : vector<8x32xf32>, vector<32x96xf32>, vector<8x96xf32> -> vector<8x96xf32>
    %c0_9 = arith.constant 0 : index
    %c0_10 = arith.constant 0 : index
    %8 = vector.load %arg7[%c0_9, %c0_10] : memref<1x96xf32, #tpu.memory_space<vmem>>, vector<1x96xf32>
    %9 = vector.broadcast %8 : vector<1x96xf32> to vector<8x96xf32>
    %10 = arith.addf %7, %9 : vector<8x96xf32>
    %11 = vector.extract_strided_slice %10 {offsets = [0, 0], sizes = [8, 32], strides = [1, 1]} : vector<8x96xf32> to vector<8x32xf32>
    %12 = vector.shape_cast %11 : vector<8x32xf32> to vector<1x8x32xf32>
    %13 = vector.extract_strided_slice %10 {offsets = [0, 32], sizes = [8, 32], strides = [1, 1]} : vector<8x96xf32> to vector<8x32xf32>
    %14 = vector.shape_cast %13 : vector<8x32xf32> to vector<1x8x32xf32>
    %15 = tpu.transpose %14, [0, 2, 1] : vector<1x8x32xf32> -> vector<1x32x8xf32>
    %16 = vector.extract_strided_slice %10 {offsets = [0, 64], sizes = [8, 32], strides = [1, 1]} : vector<8x96xf32> to vector<8x32xf32>
    %17 = vector.shape_cast %16 : vector<8x32xf32> to vector<1x8x32xf32>
    %c0_11 = arith.constant 0 : index
    %c0_12 = arith.constant 0 : index
    %c0_13 = arith.constant 0 : index
    %18 = vector.load %arg3[%c0_11, %c0_12, %c0_13] : memref<1x8x8xf32, #tpu.memory_space<vmem>>, vector<1x8x8xf32>
    %c0_14 = arith.constant 0 : index
    %c0_15 = arith.constant 0 : index
    %c0_16 = arith.constant 0 : index
    %19 = vector.load %arg4[%c0_14, %c0_15, %c0_16] : memref<1x8x8xf32, #tpu.memory_space<vmem>>, vector<1x8x8xf32>
    %cst_17 = arith.constant 1.000000e+00 : f32
    %20 = vector.broadcast %cst_17 : f32 to vector<1x8x8xf32>
    %21 = arith.addf %18, %20 : vector<1x8x8xf32>
    %22 = math.log %21 : vector<1x8x8xf32>
    %cst_18 = arith.constant 0.434294492 : f32
    %23 = vector.broadcast %cst_18 : f32 to vector<1x8x8xf32>
    %24 = arith.mulf %22, %23 : vector<1x8x8xf32>
    %cst_19 = arith.constant -1.000000e+09 : f32
    %25 = vector.broadcast %cst_19 : f32 to vector<1x8x8xf32>
    %26 = arith.select %3, %25, %24 : vector<1x8x8xi1>, vector<1x8x8xf32>
    %27 = math.absf %19 : vector<1x8x8xf32>
    %cst_20 = arith.constant 0.000000e+00 : f32
    %28 = vector.broadcast %cst_20 : f32 to vector<1x8x8xf32>
    %29 = arith.subf %28, %27 : vector<1x8x8xf32>
    %30 = math.exp %29 : vector<1x8x8xf32>
    %cst_21 = arith.constant -1.000000e+09 : f32
    %31 = vector.broadcast %cst_21 : f32 to vector<1x8x8xf32>
    %32 = arith.select %3, %31, %30 : vector<1x8x8xi1>, vector<1x8x8xf32>
    %33 = arith.addf %32, %26 : vector<1x8x8xf32>
    %cst_22 = arith.constant dense<0xFF800000> : vector<1x8xf32>
    %34 = vector.multi_reduction <maximumf>, %33, %cst_22 [2] : vector<1x8x8xf32> to vector<1x8xf32>
    %35 = vector.shape_cast %34 : vector<1x8xf32> to vector<1x8x1xf32>
    %36 = vector.broadcast %35 : vector<1x8x1xf32> to vector<1x8x8xf32>
    %37 = arith.subf %33, %36 : vector<1x8x8xf32>
    %38 = math.exp %37 : vector<1x8x8xf32>
    %cst_23 = arith.constant dense<0.000000e+00> : vector<1x8xf32>
    %39 = vector.multi_reduction <add>, %38, %cst_23 [2] : vector<1x8x8xf32> to vector<1x8xf32>
    %40 = vector.shape_cast %39 : vector<1x8xf32> to vector<1x8x1xf32>
    %41 = tpu.reciprocal %40 : vector<1x8x1xf32> -> vector<1x8x1xf32>
    %42 = vector.broadcast %41 : vector<1x8x1xf32> to vector<1x8x8xf32>
    %43 = arith.mulf %38, %42 : vector<1x8x8xf32>
    "tpu.trace_start"() <{level = 10 : i32, message = "bqk,bkd->bqd"}> : () -> ()
    %cst_24 = arith.constant dense<0.000000e+00> : vector<1x8x32xf32>
    %44 = tpu.matmul %43, %17, %cst_24 {dimension_numbers = #tpu.dot_dimension_numbers<[2], [1], [1], [2], [0, 0, 0, 1, 1, 2], [0], [0]>} : vector<1x8x8xf32>, vector<1x8x32xf32>, vector<1x8x32xf32> -> vector<1x8x32xf32>
    "tpu.trace_stop"() : () -> ()
    %45 = vector.extract_strided_slice %12 {offsets = [0, 0, 0], sizes = [1, 8, 8], strides = [1, 1, 1]} : vector<1x8x32xf32> to vector<1x8x8xf32>
    %46 = vector.extract_strided_slice %15 {offsets = [0, 0, 0], sizes = [1, 8, 8], strides = [1, 1, 1]} : vector<1x32x8xf32> to vector<1x8x8xf32>
    "tpu.trace_start"() <{level = 10 : i32, message = "bqd,bdk->bqk"}> : () -> ()
    %cst_25 = arith.constant dense<0.000000e+00> : vector<1x8x8xf32>
    %47 = tpu.matmul %45, %46, %cst_25 {dimension_numbers = #tpu.dot_dimension_numbers<[2], [1], [1], [2], [0, 0, 0, 1, 1, 2], [0], [0]>} : vector<1x8x8xf32>, vector<1x8x8xf32>, vector<1x8x8xf32> -> vector<1x8x8xf32>
    "tpu.trace_stop"() : () -> ()
    %cst_26 = arith.constant 0.353553385 : f32
    %48 = vector.broadcast %cst_26 : f32 to vector<1x8x8xf32>
    %49 = arith.mulf %47, %48 : vector<1x8x8xf32>
    %cst_27 = arith.constant -1.000000e+09 : f32
    %50 = vector.broadcast %cst_27 : f32 to vector<1x8x8xf32>
    %51 = arith.select %3, %50, %49 : vector<1x8x8xi1>, vector<1x8x8xf32>
    %cst_28 = arith.constant dense<0xFF800000> : vector<1x8xf32>
    %52 = vector.multi_reduction <maximumf>, %51, %cst_28 [2] : vector<1x8x8xf32> to vector<1x8xf32>
    %53 = vector.shape_cast %52 : vector<1x8xf32> to vector<1x8x1xf32>
    %54 = vector.broadcast %53 : vector<1x8x1xf32> to vector<1x8x8xf32>
    %55 = arith.subf %51, %54 : vector<1x8x8xf32>
    %56 = math.exp %55 : vector<1x8x8xf32>
    %cst_29 = arith.constant dense<0.000000e+00> : vector<1x8xf32>
    %57 = vector.multi_reduction <add>, %56, %cst_29 [2] : vector<1x8x8xf32> to vector<1x8xf32>
    %58 = vector.shape_cast %57 : vector<1x8xf32> to vector<1x8x1xf32>
    %59 = tpu.reciprocal %58 : vector<1x8x1xf32> -> vector<1x8x1xf32>
    %60 = vector.broadcast %59 : vector<1x8x1xf32> to vector<1x8x8xf32>
    %61 = arith.mulf %56, %60 : vector<1x8x8xf32>
    %62 = vector.extract_strided_slice %17 {offsets = [0, 0, 0], sizes = [1, 8, 8], strides = [1, 1, 1]} : vector<1x8x32xf32> to vector<1x8x8xf32>
    "tpu.trace_start"() <{level = 10 : i32, message = "bqk,bkd->bqd"}> : () -> ()
    %cst_30 = arith.constant dense<0.000000e+00> : vector<1x8x8xf32>
    %63 = tpu.matmul %61, %62, %cst_30 {dimension_numbers = #tpu.dot_dimension_numbers<[2], [1], [1], [2], [0, 0, 0, 1, 1, 2], [0], [0]>} : vector<1x8x8xf32>, vector<1x8x8xf32>, vector<1x8x8xf32> -> vector<1x8x8xf32>
    "tpu.trace_stop"() : () -> ()
    %64 = vector.extract_strided_slice %12 {offsets = [0, 0, 8], sizes = [1, 8, 8], strides = [1, 1, 1]} : vector<1x8x32xf32> to vector<1x8x8xf32>
    %65 = vector.extract_strided_slice %15 {offsets = [0, 8, 0], sizes = [1, 8, 8], strides = [1, 1, 1]} : vector<1x32x8xf32> to vector<1x8x8xf32>
    "tpu.trace_start"() <{level = 10 : i32, message = "bqd,bdk->bqk"}> : () -> ()
    %cst_31 = arith.constant dense<0.000000e+00> : vector<1x8x8xf32>
    %66 = tpu.matmul %64, %65, %cst_31 {dimension_numbers = #tpu.dot_dimension_numbers<[2], [1], [1], [2], [0, 0, 0, 1, 1, 2], [0], [0]>} : vector<1x8x8xf32>, vector<1x8x8xf32>, vector<1x8x8xf32> -> vector<1x8x8xf32>
    "tpu.trace_stop"() : () -> ()
    %cst_32 = arith.constant 0.353553385 : f32
    %67 = vector.broadcast %cst_32 : f32 to vector<1x8x8xf32>
    %68 = arith.mulf %66, %67 : vector<1x8x8xf32>
    %cst_33 = arith.constant -1.000000e+09 : f32
    %69 = vector.broadcast %cst_33 : f32 to vector<1x8x8xf32>
    %70 = arith.select %3, %69, %68 : vector<1x8x8xi1>, vector<1x8x8xf32>
    %cst_34 = arith.constant dense<0xFF800000> : vector<1x8xf32>
    %71 = vector.multi_reduction <maximumf>, %70, %cst_34 [2] : vector<1x8x8xf32> to vector<1x8xf32>
    %72 = vector.shape_cast %71 : vector<1x8xf32> to vector<1x8x1xf32>
    %73 = vector.broadcast %72 : vector<1x8x1xf32> to vector<1x8x8xf32>
    %74 = arith.subf %70, %73 : vector<1x8x8xf32>
    %75 = math.exp %74 : vector<1x8x8xf32>
    %cst_35 = arith.constant dense<0.000000e+00> : vector<1x8xf32>
    %76 = vector.multi_reduction <add>, %75, %cst_35 [2] : vector<1x8x8xf32> to vector<1x8xf32>
    %77 = vector.shape_cast %76 : vector<1x8xf32> to vector<1x8x1xf32>
    %78 = tpu.reciprocal %77 : vector<1x8x1xf32> -> vector<1x8x1xf32>
    %79 = vector.broadcast %78 : vector<1x8x1xf32> to vector<1x8x8xf32>
    %80 = arith.mulf %75, %79 : vector<1x8x8xf32>
    %81 = vector.extract_strided_slice %17 {offsets = [0, 0, 8], sizes = [1, 8, 8], strides = [1, 1, 1]} : vector<1x8x32xf32> to vector<1x8x8xf32>
    "tpu.trace_start"() <{level = 10 : i32, message = "bqk,bkd->bqd"}> : () -> ()
    %cst_36 = arith.constant dense<0.000000e+00> : vector<1x8x8xf32>
    %82 = tpu.matmul %80, %81, %cst_36 {dimension_numbers = #tpu.dot_dimension_numbers<[2], [1], [1], [2], [0, 0, 0, 1, 1, 2], [0], [0]>} : vector<1x8x8xf32>, vector<1x8x8xf32>, vector<1x8x8xf32> -> vector<1x8x8xf32>
    "tpu.trace_stop"() : () -> ()
    %83 = vector.extract_strided_slice %12 {offsets = [0, 0, 16], sizes = [1, 8, 8], strides = [1, 1, 1]} : vector<1x8x32xf32> to vector<1x8x8xf32>
    %84 = vector.extract_strided_slice %15 {offsets = [0, 16, 0], sizes = [1, 8, 8], strides = [1, 1, 1]} : vector<1x32x8xf32> to vector<1x8x8xf32>
    "tpu.trace_start"() <{level = 10 : i32, message = "bqd,bdk->bqk"}> : () -> ()
    %cst_37 = arith.constant dense<0.000000e+00> : vector<1x8x8xf32>
    %85 = tpu.matmul %83, %84, %cst_37 {dimension_numbers = #tpu.dot_dimension_numbers<[2], [1], [1], [2], [0, 0, 0, 1, 1, 2], [0], [0]>} : vector<1x8x8xf32>, vector<1x8x8xf32>, vector<1x8x8xf32> -> vector<1x8x8xf32>
    "tpu.trace_stop"() : () -> ()
    %cst_38 = arith.constant 0.353553385 : f32
    %86 = vector.broadcast %cst_38 : f32 to vector<1x8x8xf32>
    %87 = arith.mulf %85, %86 : vector<1x8x8xf32>
    %cst_39 = arith.constant -1.000000e+09 : f32
    %88 = vector.broadcast %cst_39 : f32 to vector<1x8x8xf32>
    %89 = arith.select %3, %88, %87 : vector<1x8x8xi1>, vector<1x8x8xf32>
    %cst_40 = arith.constant dense<0xFF800000> : vector<1x8xf32>
    %90 = vector.multi_reduction <maximumf>, %89, %cst_40 [2] : vector<1x8x8xf32> to vector<1x8xf32>
    %91 = vector.shape_cast %90 : vector<1x8xf32> to vector<1x8x1xf32>
    %92 = vector.broadcast %91 : vector<1x8x1xf32> to vector<1x8x8xf32>
    %93 = arith.subf %89, %92 : vector<1x8x8xf32>
    %94 = math.exp %93 : vector<1x8x8xf32>
    %cst_41 = arith.constant dense<0.000000e+00> : vector<1x8xf32>
    %95 = vector.multi_reduction <add>, %94, %cst_41 [2] : vector<1x8x8xf32> to vector<1x8xf32>
    %96 = vector.shape_cast %95 : vector<1x8xf32> to vector<1x8x1xf32>
    %97 = tpu.reciprocal %96 : vector<1x8x1xf32> -> vector<1x8x1xf32>
    %98 = vector.broadcast %97 : vector<1x8x1xf32> to vector<1x8x8xf32>
    %99 = arith.mulf %94, %98 : vector<1x8x8xf32>
    %100 = vector.extract_strided_slice %17 {offsets = [0, 0, 16], sizes = [1, 8, 8], strides = [1, 1, 1]} : vector<1x8x32xf32> to vector<1x8x8xf32>
    "tpu.trace_start"() <{level = 10 : i32, message = "bqk,bkd->bqd"}> : () -> ()
    %cst_42 = arith.constant dense<0.000000e+00> : vector<1x8x8xf32>
    %101 = tpu.matmul %99, %100, %cst_42 {dimension_numbers = #tpu.dot_dimension_numbers<[2], [1], [1], [2], [0, 0, 0, 1, 1, 2], [0], [0]>} : vector<1x8x8xf32>, vector<1x8x8xf32>, vector<1x8x8xf32> -> vector<1x8x8xf32>
    "tpu.trace_stop"() : () -> ()
    %102 = vector.extract_strided_slice %12 {offsets = [0, 0, 24], sizes = [1, 8, 8], strides = [1, 1, 1]} : vector<1x8x32xf32> to vector<1x8x8xf32>
    %103 = vector.extract_strided_slice %15 {offsets = [0, 24, 0], sizes = [1, 8, 8], strides = [1, 1, 1]} : vector<1x32x8xf32> to vector<1x8x8xf32>
    "tpu.trace_start"() <{level = 10 : i32, message = "bqd,bdk->bqk"}> : () -> ()
    %cst_43 = arith.constant dense<0.000000e+00> : vector<1x8x8xf32>
    %104 = tpu.matmul %102, %103, %cst_43 {dimension_numbers = #tpu.dot_dimension_numbers<[2], [1], [1], [2], [0, 0, 0, 1, 1, 2], [0], [0]>} : vector<1x8x8xf32>, vector<1x8x8xf32>, vector<1x8x8xf32> -> vector<1x8x8xf32>
    "tpu.trace_stop"() : () -> ()
    %cst_44 = arith.constant 0.353553385 : f32
    %105 = vector.broadcast %cst_44 : f32 to vector<1x8x8xf32>
    %106 = arith.mulf %104, %105 : vector<1x8x8xf32>
    %cst_45 = arith.constant -1.000000e+09 : f32
    %107 = vector.broadcast %cst_45 : f32 to vector<1x8x8xf32>
    %108 = arith.select %3, %107, %106 : vector<1x8x8xi1>, vector<1x8x8xf32>
    %cst_46 = arith.constant dense<0xFF800000> : vector<1x8xf32>
    %109 = vector.multi_reduction <maximumf>, %108, %cst_46 [2] : vector<1x8x8xf32> to vector<1x8xf32>
    %110 = vector.shape_cast %109 : vector<1x8xf32> to vector<1x8x1xf32>
    %111 = vector.broadcast %110 : vector<1x8x1xf32> to vector<1x8x8xf32>
    %112 = arith.subf %108, %111 : vector<1x8x8xf32>
    %113 = math.exp %112 : vector<1x8x8xf32>
    %cst_47 = arith.constant dense<0.000000e+00> : vector<1x8xf32>
    %114 = vector.multi_reduction <add>, %113, %cst_47 [2] : vector<1x8x8xf32> to vector<1x8xf32>
    %115 = vector.shape_cast %114 : vector<1x8xf32> to vector<1x8x1xf32>
    %116 = tpu.reciprocal %115 : vector<1x8x1xf32> -> vector<1x8x1xf32>
    %117 = vector.broadcast %116 : vector<1x8x1xf32> to vector<1x8x8xf32>
    %118 = arith.mulf %113, %117 : vector<1x8x8xf32>
    %119 = vector.extract_strided_slice %17 {offsets = [0, 0, 24], sizes = [1, 8, 8], strides = [1, 1, 1]} : vector<1x8x32xf32> to vector<1x8x8xf32>
    "tpu.trace_start"() <{level = 10 : i32, message = "bqk,bkd->bqd"}> : () -> ()
    %cst_48 = arith.constant dense<0.000000e+00> : vector<1x8x8xf32>
    %120 = tpu.matmul %118, %119, %cst_48 {dimension_numbers = #tpu.dot_dimension_numbers<[2], [1], [1], [2], [0, 0, 0, 1, 1, 2], [0], [0]>} : vector<1x8x8xf32>, vector<1x8x8xf32>, vector<1x8x8xf32> -> vector<1x8x8xf32>
    "tpu.trace_stop"() : () -> ()
    %121 = tpu.concatenate %63, %82, %101, %120 in 2 : vector<1x8x8xf32>, vector<1x8x8xf32>, vector<1x8x8xf32>, vector<1x8x8xf32> -> vector<1x8x32xf32>
    %cst_49 = arith.constant 1.000000e+00 : f32
    %122 = arith.subf %cst_49, %0 : f32
    %123 = vector.broadcast %122 : f32 to vector<1x8x32xf32>
    %124 = arith.mulf %123, %121 : vector<1x8x32xf32>
    %125 = vector.broadcast %0 : f32 to vector<1x8x32xf32>
    %126 = arith.mulf %125, %44 : vector<1x8x32xf32>
    %127 = arith.addf %124, %126 : vector<1x8x32xf32>
    %128 = vector.shape_cast %127 : vector<1x8x32xf32> to vector<8x32xf32>
    %c0_50 = arith.constant 0 : index
    %c0_51 = arith.constant 0 : index
    %129 = vector.load %arg8[%c0_50, %c0_51] : memref<32x32xf32, #tpu.memory_space<vmem>>, vector<32x32xf32>
    %cst_52 = arith.constant dense<0.000000e+00> : vector<8x32xf32>
    %130 = tpu.matmul %128, %129, %cst_52 {dimension_numbers = #tpu.dot_dimension_numbers<[1], [0], [0], [1], [0, 0, 1, 1], [], []>} : vector<8x32xf32>, vector<32x32xf32>, vector<8x32xf32> -> vector<8x32xf32>
    %c0_53 = arith.constant 0 : index
    %c0_54 = arith.constant 0 : index
    %131 = vector.load %arg9[%c0_53, %c0_54] : memref<1x32xf32, #tpu.memory_space<vmem>>, vector<1x32xf32>
    %132 = vector.broadcast %131 : vector<1x32xf32> to vector<8x32xf32>
    %133 = arith.addf %130, %132 : vector<8x32xf32>
    %c0_55 = arith.constant 0 : index
    %c0_56 = arith.constant 0 : index
    %134 = vector.load %arg10[%c0_55, %c0_56] : memref<32x32xf32, #tpu.memory_space<vmem>>, vector<32x32xf32>
    %cst_57 = arith.constant dense<0.000000e+00> : vector<8x32xf32>
    %135 = tpu.matmul %133, %134, %cst_57 {dimension_numbers = #tpu.dot_dimension_numbers<[1], [0], [0], [1], [0, 0, 1, 1], [], []>} : vector<8x32xf32>, vector<32x32xf32>, vector<8x32xf32> -> vector<8x32xf32>
    %c0_58 = arith.constant 0 : index
    %c0_59 = arith.constant 0 : index
    %136 = vector.load %arg11[%c0_58, %c0_59] : memref<1x32xf32, #tpu.memory_space<vmem>>, vector<1x32xf32>
    %137 = vector.broadcast %136 : vector<1x32xf32> to vector<8x32xf32>
    %138 = arith.addf %135, %137 : vector<8x32xf32>
    %139 = arith.addf %133, %138 : vector<8x32xf32>
    %cst_60 = arith.constant dense<0.000000e+00> : vector<8xf32>
    %140 = vector.multi_reduction <add>, %139, %cst_60 [1] : vector<8x32xf32> to vector<8xf32>
    %141 = vector.shape_cast %140 : vector<8xf32> to vector<8x1xf32>
    %cst_61 = arith.constant 3.200000e+01 : f32
    %142 = vector.broadcast %cst_61 : f32 to vector<8x1xf32>
    %143 = arith.divf %141, %142 : vector<8x1xf32>
    %144 = vector.broadcast %143 : vector<8x1xf32> to vector<8x32xf32>
    %145 = arith.subf %139, %144 : vector<8x32xf32>
    %146 = arith.mulf %145, %145 : vector<8x32xf32>
    %cst_62 = arith.constant dense<0.000000e+00> : vector<8xf32>
    %147 = vector.multi_reduction <add>, %146, %cst_62 [1] : vector<8x32xf32> to vector<8xf32>
    %148 = vector.shape_cast %147 : vector<8xf32> to vector<8x1xf32>
    %cst_63 = arith.constant 3.200000e+01 : f32
    %149 = vector.broadcast %cst_63 : f32 to vector<8x1xf32>
    %150 = arith.divf %148, %149 : vector<8x1xf32>
    %151 = vector.broadcast %143 : vector<8x1xf32> to vector<8x32xf32>
    %152 = arith.subf %139, %151 : vector<8x32xf32>
    %cst_64 = arith.constant 9.99999974E-6 : f32
    %153 = vector.broadcast %cst_64 : f32 to vector<8x1xf32>
    %154 = arith.addf %150, %153 : vector<8x1xf32>
    %155 = math.rsqrt %154 : vector<8x1xf32>
    %156 = vector.broadcast %155 : vector<8x1xf32> to vector<8x32xf32>
    %157 = arith.mulf %152, %156 : vector<8x32xf32>
    %c0_65 = arith.constant 0 : index
    %c0_66 = arith.constant 0 : index
    %158 = vector.load %arg12[%c0_65, %c0_66] : memref<1x32xf32, #tpu.memory_space<vmem>>, vector<1x32xf32>
    %159 = vector.broadcast %158 : vector<1x32xf32> to vector<8x32xf32>
    %160 = arith.mulf %157, %159 : vector<8x32xf32>
    %c0_67 = arith.constant 0 : index
    %c0_68 = arith.constant 0 : index
    %161 = vector.load %arg13[%c0_67, %c0_68] : memref<1x32xf32, #tpu.memory_space<vmem>>, vector<1x32xf32>
    %162 = vector.broadcast %161 : vector<1x32xf32> to vector<8x32xf32>
    %163 = arith.addf %160, %162 : vector<8x32xf32>
    %164 = vector.shape_cast %163 : vector<8x32xf32> to vector<1x8x32xf32>
    %c0_69 = arith.constant 0 : index
    %c0_70 = arith.constant 0 : index
    %c0_71 = arith.constant 0 : index
    %165 = vector.load %arg14[%c0_69, %c0_70, %c0_71] : memref<1x8x32xf32, #tpu.memory_space<vmem>>, vector<1x8x32xf32>
    tpu.vector_store %arg14[%c0_69, %c0_70, %c0_71], %164 {strides = array<i32>} : memref<1x8x32xf32, #tpu.memory_space<vmem>>, vector<1x8x32xf32>,
    return
  }
  func.func @transform_0(%arg0: i32) -> i32 {
    %c0_i32 = arith.constant 0 : i32
    %c0_i32_0 = arith.constant 0 : i32
    return %c0_i32 : i32
  }
  func.func @transform_1(%arg0: i32) -> (i32, i32, i32) {
    %c0_i32 = arith.constant 0 : i32
    %c0_i32_0 = arith.constant 0 : i32
    %c0_i32_1 = arith.constant 0 : i32
    return %arg0, %c0_i32, %c0_i32_0 : i32, i32, i32
  }
  func.func @transform_2(%arg0: i32) -> (i32, i32, i32) {
    %c0_i32 = arith.constant 0 : i32
    %c0_i32_0 = arith.constant 0 : i32
    %c0_i32_1 = arith.constant 0 : i32
    return %arg0, %c0_i32, %c0_i32_0 : i32, i32, i32
  }
  func.func @transform_3(%arg0: i32) -> (i32, i32, i32) {
    %c0_i32 = arith.constant 0 : i32
    %c0_i32_0 = arith.constant 0 : i32
    %c0_i32_1 = arith.constant 0 : i32
    return %arg0, %c0_i32, %c0_i32_0 : i32, i32, i32
  }
  func.func @transform_4(%arg0: i32) -> (i32, i32, i32) {
    %c0_i32 = arith.constant 0 : i32
    %c0_i32_0 = arith.constant 0 : i32
    %c0_i32_1 = arith.constant 0 : i32
    return %arg0, %c0_i32, %c0_i32_0 : i32, i32, i32
  }
  func.func @transform_5(%arg0: i32) -> (i32, i32) {
    %c0_i32 = arith.constant 0 : i32
    %c0_i32_0 = arith.constant 0 : i32
    %c0_i32_1 = arith.constant 0 : i32
    return %c0_i32, %c0_i32_0 : i32, i32
  }
  func.func @transform_6(%arg0: i32) -> (i32, i32) {
    %c0_i32 = arith.constant 0 : i32
    %c0_i32_0 = arith.constant 0 : i32
    %c0_i32_1 = arith.constant 0 : i32
    return %c0_i32, %c0_i32_0 : i32, i32
  }
  func.func @transform_7(%arg0: i32) -> (i32, i32) {
    %c0_i32 = arith.constant 0 : i32
    %c0_i32_0 = arith.constant 0 : i32
    %c0_i32_1 = arith.constant 0 : i32
    return %c0_i32, %c0_i32_0 : i32, i32
  }
  func.func @transform_8(%arg0: i32) -> (i32, i32) {
    %c0_i32 = arith.constant 0 : i32
    %c0_i32_0 = arith.constant 0 : i32
    %c0_i32_1 = arith.constant 0 : i32
    return %c0_i32, %c0_i32_0 : i32, i32
  }
  func.func @transform_9(%arg0: i32) -> (i32, i32) {
    %c0_i32 = arith.constant 0 : i32
    %c0_i32_0 = arith.constant 0 : i32
    %c0_i32_1 = arith.constant 0 : i32
    return %c0_i32, %c0_i32_0 : i32, i32
  }
  func.func @transform_10(%arg0: i32) -> (i32, i32) {
    %c0_i32 = arith.constant 0 : i32
    %c0_i32_0 = arith.constant 0 : i32
    %c0_i32_1 = arith.constant 0 : i32
    return %c0_i32, %c0_i32_0 : i32, i32
  }
  func.func @transform_11(%arg0: i32) -> (i32, i32) {
    %c0_i32 = arith.constant 0 : i32
    %c0_i32_0 = arith.constant 0 : i32
    %c0_i32_1 = arith.constant 0 : i32
    return %c0_i32, %c0_i32_0 : i32, i32
  }
  func.func @transform_12(%arg0: i32) -> (i32, i32) {
    %c0_i32 = arith.constant 0 : i32
    %c0_i32_0 = arith.constant 0 : i32
    %c0_i32_1 = arith.constant 0 : i32
    return %c0_i32, %c0_i32_0 : i32, i32
  }
  func.func @transform_13(%arg0: i32) -> (i32, i32, i32) {
    %c0_i32 = arith.constant 0 : i32
    %c0_i32_0 = arith.constant 0 : i32
    %c0_i32_1 = arith.constant 0 : i32
    return %arg0, %c0_i32, %c0_i32_0 : i32, i32, i32
  }
}

</mosaic_0001>

<llo_original>
// kernel: tpu_custom_call.1
$region0: #{tpu_custom_call.1}
  #allocation0 [shape = 'u32[]', space=smem, size = 0x4, offset = 0x4, fixed_abs, tag = 'smem constant byte address 0x4 - core index']
  #allocation1 [shape = 'u32[144,128]{1,0:T(1,128)}', space=vmem, size = 0x12000, scoped, tag = 'internal scratch']
  #allocation2 [shape = 'f32[1]{0:T(128)S(6)}', space=smem, size = 0x200, scoped, tag = 'scoped memory for tpu_custom_call.1']
  %s0 = inlined_call_operand.<no memory space> [shape: f32[1], index: 0, kind: input, shape index: {}]
  %s1 = inlined_call_operand.hbm [shape: f32[2,8,32], index: 1, kind: input, shape index: {}]
  %s2 = inlined_call_operand.hbm [shape: f32[2,8,8], index: 2, kind: input, shape index: {}]
  %s3 = inlined_call_operand.hbm [shape: f32[2,8,8], index: 3, kind: input, shape index: {}]
  %s4 = inlined_call_operand.hbm [shape: f32[2,8,8], index: 4, kind: input, shape index: {}]
  %s5 = inlined_call_operand.hbm [shape: f32[32,96], index: 5, kind: input, shape index: {}]
  %s6 = inlined_call_operand.hbm [shape: f32[1,96], index: 6, kind: input, shape index: {}]
  %s7 = inlined_call_operand.hbm [shape: f32[32,32], index: 7, kind: input, shape index: {}]
  %s8 = inlined_call_operand.hbm [shape: f32[1,32], index: 8, kind: input, shape index: {}]
  %s9 = inlined_call_operand.hbm [shape: f32[32,32], index: 9, kind: input, shape index: {}]
  %s10 = inlined_call_operand.hbm [shape: f32[1,32], index: 10, kind: input, shape index: {}]
  %s11 = inlined_call_operand.hbm [shape: f32[1,32], index: 11, kind: input, shape index: {}]
  %s12 = inlined_call_operand.hbm [shape: f32[1,32], index: 12, kind: input, shape index: {}]
  %s13 = inlined_call_operand.hbm [shape: f32[2,8,32], index: 13, kind: output, shape index: {}]
  %s14 = sld [smem:[#allocation0]]
  $region133: #{tpu_custom_call.1} parent=0
    _
  %s16 = ssub.s32 1, %s14
  %s17 = scalar_select 0, %s16, %s14
  %18 = sst [smem:[#allocation2]] %s0
  $region1: #{tpu_custom_call.1} parent=0
    #allocation3 [shape = 'u8[8192]{0}', space=vmem, size = 0x2000, scoped, tag = 'input window, operand 1']
    #allocation4 [shape = 's32[2]{0}', space=sflag, size = 0x8, scoped, tag = 'scoped memory for tpu_custom_call.1']
    #allocation5 [shape = 's32[2]{0}', space=sflag, size = 0x8, scoped, tag = 'scoped memory for tpu_custom_call.1']
    #allocation6 [shape = 'u8[8192]{0}', space=vmem, size = 0x2000, scoped, tag = 'input window, operand 2']
    #allocation7 [shape = 's32[2]{0}', space=sflag, size = 0x8, scoped, tag = 'scoped memory for tpu_custom_call.1']
    #allocation8 [shape = 'u8[8192]{0}', space=vmem, size = 0x2000, scoped, tag = 'input window, operand 3']
    #allocation9 [shape = 'u8[8192]{0}', space=vmem, size = 0x2000, scoped, tag = 'input window, operand 4']
    #allocation10 [shape = 's32[2]{0}', space=sflag, size = 0x8, scoped, tag = 'scoped memory for tpu_custom_call.1']
    #allocation11 [shape = 'u8[16384]{0}', space=vmem, size = 0x4000, scoped, tag = 'input window, operand 5, single buffered']
    #allocation12 [shape = 'u8[512]{0}', space=vmem, size = 0x400, scoped, tag = 'input window, operand 6, single buffered']
    #allocation13 [shape = 's32[1]{0}', space=sflag, size = 0x4, scoped, tag = 'scoped memory for tpu_custom_call.1']
    #allocation14 [shape = 'u8[16384]{0}', space=vmem, size = 0x4000, scoped, tag = 'input window, operand 7, single buffered']
    #allocation15 [shape = 'u8[512]{0}', space=vmem, size = 0x400, scoped, tag = 'input window, operand 8, single buffered']
    #allocation16 [shape = 's32[1]{0}', space=sflag, size = 0x4, scoped, tag = 'scoped memory for tpu_custom_call.1']
    #allocation17 [shape = 'u8[16384]{0}', space=vmem, size = 0x4000, scoped, tag = 'input window, operand 9, single buffered']
    #allocation18 [shape = 'u8[512]{0}', space=vmem, size = 0x400, scoped, tag = 'input window, operand 10, single buffered']
    #allocation19 [shape = 's32[1]{0}', space=sflag, size = 0x4, scoped, tag = 'scoped memory for tpu_custom_call.1']
    #allocation20 [shape = 'u8[512]{0}', space=vmem, size = 0x400, scoped, tag = 'input window, operand 11, single buffered']
    #allocation21 [shape = 'u8[512]{0}', space=vmem, size = 0x400, scoped, tag = 'input window, operand 12, single buffered']
    #allocation22 [shape = 's32[1]{0}', space=sflag, size = 0x4, scoped, tag = 'scoped memory for tpu_custom_call.1']
    #allocation23 [shape = 'u8[8192]{0}', space=vmem, size = 0x2000, scoped, tag = 'output window, operand 0']
    %19 = vsyncpa [#allocation4], 0
    %s20 = scalar_lea.sflag [#allocation4], 1
    %21 = vsyncpa %s20, 0
    %22 = vsyncpa [#allocation7], 0
    %s23 = scalar_lea.sflag [#allocation7], 1
    %24 = vsyncpa %s23, 0
    %25 = vsyncpa [#allocation10], 0
    %s26 = scalar_lea.sflag [#allocation10], 1
    %27 = vsyncpa %s26, 0
    %28 = vsyncpa [#allocation13], 0
    %29 = vsyncpa [#allocation16], 0
    %30 = vsyncpa [#allocation19], 0
    %31 = vsyncpa [#allocation22], 0
    %32 = vsyncpa [#allocation5], 0
    %s33 = scalar_lea.sflag [#allocation5], 1
    %34 = vsyncpa %s33, 0
    loop: start=0, step=1, limit=4
    $region2: #{tpu_custom_call.1} parent=1 // loop_pre_header
      _
    $region3: #{tpu_custom_call.1} parent=1 // loop_header
      %s36 = sphi 0, %s40
      %p37 = scmp.ge.s32.totalorder %s36, 4
      %s44 = sphi 0, %s44
      %s46 = sphi 0, %s44
      %s47 = sphi 0, %s46
      %s61 = sphi 0, %s47
      %s67 = sphi 0, %s69
      %s70 = sphi 0, %s67
      %s71 = sphi 0, %s70
      %s87 = sphi 0, %s71
      %s93 = sphi 0, %s95
      %s96 = sphi 0, %s93
      %s97 = sphi 0, %s96
      %s113 = sphi 0, %s97
      %s119 = sphi 0, %s121
      %s122 = sphi 0, %s119
      %s123 = sphi 0, %s122
      %s139 = sphi 0, %s123
      %s145 = sphi 0, %s147
      %s148 = sphi 0, %s145
      %s149 = sphi 0, %s148
      %s165 = sphi 0, %s149
      %s169 = sphi 0, %s169
      %s171 = sphi 0, %s169
      %s172 = sphi 0, %s171
      %s186 = sphi 0, %s172
      %s190 = sphi 0, %s190
      %s192 = sphi 0, %s190
      %s193 = sphi 0, %s192
      %s207 = sphi 0, %s193
      %s211 = sphi 0, %s211
      %s213 = sphi 0, %s211
      %s214 = sphi 0, %s213
      %s228 = sphi 0, %s214
      %s232 = sphi 0, %s232
      %s234 = sphi 0, %s232
      %s235 = sphi 0, %s234
      %s249 = sphi 0, %s235
      %s253 = sphi 0, %s253
      %s255 = sphi 0, %s253
      %s256 = sphi 0, %s255
      %s270 = sphi 0, %s256
      %s274 = sphi 0, %s274
      %s276 = sphi 0, %s274
      %s277 = sphi 0, %s276
      %s291 = sphi 0, %s277
      %s295 = sphi 0, %s295
      %s297 = sphi 0, %s295
      %s298 = sphi 0, %s297
      %s312 = sphi 0, %s298
      %s316 = sphi 0, %s316
      %s318 = sphi 0, %s316
      %s319 = sphi 0, %s318
      %s333 = sphi 0, %s319
      %s339 = sphi 0, %s341
      %s342 = sphi 0, %s339
      %s343 = sphi 0, %s342
      %s359 = sphi 0, %s343
    $region4: #{tpu_custom_call.1} parent=1 // loop_header_branch
      %39 = sbr.rel (%p37) target = $region8
    $region5: #{tpu_custom_call.1} parent=1 // loop_body
      %s41 = ssub.s32 %s36, 1
      %s42 = ssub.s32 %s36, 2
      %s43 = sadd.s32 %s36, 1
      %s45 = sadd.s32 %s44, 1
      %p48 = scmp.eq.s32.totalorder %s36, 1
      %p49 = scmp.ne.s32.totalorder %s44, %s46
      %p50 = scmp.eq.s32.totalorder %s36, 0
      %p51 = por %p49, %p50
      %p52 = scmp.ne.s32.totalorder %s44, %s46
      %p53 = scmp.eq.s32.totalorder %s41, 1
      %p54 = por %p52, %p53
      %p55 = scmp.ne.s32.totalorder %s46, %s47
      %p56 = scmp.eq.s32.totalorder %s41, 0
      %p57 = por %p55, %p56
      %p58 = scmp.ne.s32.totalorder %s46, %s47
      %p59 = scmp.eq.s32.totalorder %s42, 1
      %p60 = por %p58, %p59
      %p62 = scmp.ne.s32.totalorder %s47, %s61
      %p63 = scmp.eq.s32.totalorder %s42, 0
      %p64 = por %p62, %p63
      %s65 = ssub.s32 %s36, %s43
      %p66 = scmp.eq.s32.totalorder %s65, 0
      %s68 = sadd.s32 %s67, 1
      %s69 = scalar_select %p66, %s67, %s68
      %p72 = pneg %p66
      %p73 = scmp.eq.s32.totalorder %s36, 1
      %p74 = por %p72, %p73
      %p75 = scmp.ne.s32.totalorder %s67, %s70
      %p76 = scmp.eq.s32.totalorder %s36, 0
      %p77 = por %p75, %p76
      %p78 = scmp.ne.s32.totalorder %s67, %s70
      %p79 = scmp.eq.s32.totalorder %s41, 1
      %p80 = por %p78, %p79
      %p81 = scmp.ne.s32.totalorder %s70, %s71
      %p82 = scmp.eq.s32.totalorder %s41, 0
      %p83 = por %p81, %p82
      %p84 = scmp.ne.s32.totalorder %s70, %s71
      %p85 = scmp.eq.s32.totalorder %s42, 1
      %p86 = por %p84, %p85
      %p88 = scmp.ne.s32.totalorder %s71, %s87
      %p89 = scmp.eq.s32.totalorder %s42, 0
      %p90 = por %p88, %p89
      %s91 = ssub.s32 %s36, %s43
      %p92 = scmp.eq.s32.totalorder %s91, 0
      %s94 = sadd.s32 %s93, 1
      %s95 = scalar_select %p92, %s93, %s94
      %p98 = pneg %p92
      %p99 = scmp.eq.s32.totalorder %s36, 1
      %p100 = por %p98, %p99
      %p101 = scmp.ne.s32.totalorder %s93, %s96
      %p102 = scmp.eq.s32.totalorder %s36, 0
      %p103 = por %p101, %p102
      %p104 = scmp.ne.s32.totalorder %s93, %s96
      %p105 = scmp.eq.s32.totalorder %s41, 1
      %p106 = por %p104, %p105
      %p107 = scmp.ne.s32.totalorder %s96, %s97
      %p108 = scmp.eq.s32.totalorder %s41, 0
      %p109 = por %p107, %p108
      %p110 = scmp.ne.s32.totalorder %s96, %s97
      %p111 = scmp.eq.s32.totalorder %s42, 1
      %p112 = por %p110, %p111
      %p114 = scmp.ne.s32.totalorder %s97, %s113
      %p115 = scmp.eq.s32.totalorder %s42, 0
      %p116 = por %p114, %p115
      %s117 = ssub.s32 %s36, %s43
      %p118 = scmp.eq.s32.totalorder %s117, 0
      %s120 = sadd.s32 %s119, 1
      %s121 = scalar_select %p118, %s119, %s120
      %p124 = pneg %p118
      %p125 = scmp.eq.s32.totalorder %s36, 1
      %p126 = por %p124, %p125
      %p127 = scmp.ne.s32.totalorder %s119, %s122
      %p128 = scmp.eq.s32.totalorder %s36, 0
      %p129 = por %p127, %p128
      %p130 = scmp.ne.s32.totalorder %s119, %s122
      %p131 = scmp.eq.s32.totalorder %s41, 1
      %p132 = por %p130, %p131
      %p133 = scmp.ne.s32.totalorder %s122, %s123
      %p134 = scmp.eq.s32.totalorder %s41, 0
      %p135 = por %p133, %p134
      %p136 = scmp.ne.s32.totalorder %s122, %s123
      %p137 = scmp.eq.s32.totalorder %s42, 1
      %p138 = por %p136, %p137
      %p140 = scmp.ne.s32.totalorder %s123, %s139
      %p141 = scmp.eq.s32.totalorder %s42, 0
      %p142 = por %p140, %p141
      %s143 = ssub.s32 %s36, %s43
      %p144 = scmp.eq.s32.totalorder %s143, 0
      %s146 = sadd.s32 %s145, 1
      %s147 = scalar_select %p144, %s145, %s146
      %p150 = pneg %p144
      %p151 = scmp.eq.s32.totalorder %s36, 1
      %p152 = por %p150, %p151
      %p153 = scmp.ne.s32.totalorder %s145, %s148
      %p154 = scmp.eq.s32.totalorder %s36, 0
      %p155 = por %p153, %p154
      %p156 = scmp.ne.s32.totalorder %s145, %s148
      %p157 = scmp.eq.s32.totalorder %s41, 1
      %p158 = por %p156, %p157
      %p159 = scmp.ne.s32.totalorder %s148, %s149
      %p160 = scmp.eq.s32.totalorder %s41, 0
      %p161 = por %p159, %p160
      %p162 = scmp.ne.s32.totalorder %s148, %s149
      %p163 = scmp.eq.s32.totalorder %s42, 1
      %p164 = por %p162, %p163
      %p166 = scmp.ne.s32.totalorder %s149, %s165
      %p167 = scmp.eq.s32.totalorder %s42, 0
      %p168 = por %p166, %p167
      %s170 = sadd.s32 %s169, 1
      %p173 = scmp.eq.s32.totalorder %s36, 1
      %p174 = scmp.ne.s32.totalorder %s169, %s171
      %p175 = scmp.eq.s32.totalorder %s36, 0
      %p176 = por %p174, %p175
      %p177 = scmp.ne.s32.totalorder %s169, %s171
      %p178 = scmp.eq.s32.totalorder %s41, 1
      %p179 = por %p177, %p178
      %p180 = scmp.ne.s32.totalorder %s171, %s172
      %p181 = scmp.eq.s32.totalorder %s41, 0
      %p182 = por %p180, %p181
      %p183 = scmp.ne.s32.totalorder %s171, %s172
      %p184 = scmp.eq.s32.totalorder %s42, 1
      %p185 = por %p183, %p184
      %p187 = scmp.ne.s32.totalorder %s172, %s186
      %p188 = scmp.eq.s32.totalorder %s42, 0
      %p189 = por %p187, %p188
      %s191 = sadd.s32 %s190, 1
      %p194 = scmp.eq.s32.totalorder %s36, 1
      %p195 = scmp.ne.s32.totalorder %s190, %s192
      %p196 = scmp.eq.s32.totalorder %s36, 0
      %p197 = por %p195, %p196
      %p198 = scmp.ne.s32.totalorder %s190, %s192
      %p199 = scmp.eq.s32.totalorder %s41, 1
      %p200 = por %p198, %p199
      %p201 = scmp.ne.s32.totalorder %s192, %s193
      %p202 = scmp.eq.s32.totalorder %s41, 0
      %p203 = por %p201, %p202
      %p204 = scmp.ne.s32.totalorder %s192, %s193
      %p205 = scmp.eq.s32.totalorder %s42, 1
      %p206 = por %p204, %p205
      %p208 = scmp.ne.s32.totalorder %s193, %s207
      %p209 = scmp.eq.s32.totalorder %s42, 0
      %p210 = por %p208, %p209
      %s212 = sadd.s32 %s211, 1
      %p215 = scmp.eq.s32.totalorder %s36, 1
      %p216 = scmp.ne.s32.totalorder %s211, %s213
      %p217 = scmp.eq.s32.totalorder %s36, 0
      %p218 = por %p216, %p217
      %p219 = scmp.ne.s32.totalorder %s211, %s213
      %p220 = scmp.eq.s32.totalorder %s41, 1
      %p221 = por %p219, %p220
      %p222 = scmp.ne.s32.totalorder %s213, %s214
      %p223 = scmp.eq.s32.totalorder %s41, 0
      %p224 = por %p222, %p223
      %p225 = scmp.ne.s32.totalorder %s213, %s214
      %p226 = scmp.eq.s32.totalorder %s42, 1
      %p227 = por %p225, %p226
      %p229 = scmp.ne.s32.totalorder %s214, %s228
      %p230 = scmp.eq.s32.totalorder %s42, 0
      %p231 = por %p229, %p230
      %s233 = sadd.s32 %s232, 1
      %p236 = scmp.eq.s32.totalorder %s36, 1
      %p237 = scmp.ne.s32.totalorder %s232, %s234
      %p238 = scmp.eq.s32.totalorder %s36, 0
      %p239 = por %p237, %p238
      %p240 = scmp.ne.s32.totalorder %s232, %s234
      %p241 = scmp.eq.s32.totalorder %s41, 1
      %p242 = por %p240, %p241
      %p243 = scmp.ne.s32.totalorder %s234, %s235
      %p244 = scmp.eq.s32.totalorder %s41, 0
      %p245 = por %p243, %p244
      %p246 = scmp.ne.s32.totalorder %s234, %s235
      %p247 = scmp.eq.s32.totalorder %s42, 1
      %p248 = por %p246, %p247
      %p250 = scmp.ne.s32.totalorder %s235, %s249
      %p251 = scmp.eq.s32.totalorder %s42, 0
      %p252 = por %p250, %p251
      %s254 = sadd.s32 %s253, 1
      %p257 = scmp.eq.s32.totalorder %s36, 1
      %p258 = scmp.ne.s32.totalorder %s253, %s255
      %p259 = scmp.eq.s32.totalorder %s36, 0
      %p260 = por %p258, %p259
      %p261 = scmp.ne.s32.totalorder %s253, %s255
      %p262 = scmp.eq.s32.totalorder %s41, 1
      %p263 = por %p261, %p262
      %p264 = scmp.ne.s32.totalorder %s255, %s256
      %p265 = scmp.eq.s32.totalorder %s41, 0
      %p266 = por %p264, %p265
      %p267 = scmp.ne.s32.totalorder %s255, %s256
      %p268 = scmp.eq.s32.totalorder %s42, 1
      %p269 = por %p267, %p268
      %p271 = scmp.ne.s32.totalorder %s256, %s270
      %p272 = scmp.eq.s32.totalorder %s42, 0
      %p273 = por %p271, %p272
      %s275 = sadd.s32 %s274, 1
      %p278 = scmp.eq.s32.totalorder %s36, 1
      %p279 = scmp.ne.s32.totalorder %s274, %s276
      %p280 = scmp.eq.s32.totalorder %s36, 0
      %p281 = por %p279, %p280
      %p282 = scmp.ne.s32.totalorder %s274, %s276
      %p283 = scmp.eq.s32.totalorder %s41, 1
      %p284 = por %p282, %p283
      %p285 = scmp.ne.s32.totalorder %s276, %s277
      %p286 = scmp.eq.s32.totalorder %s41, 0
      %p287 = por %p285, %p286
      %p288 = scmp.ne.s32.totalorder %s276, %s277
      %p289 = scmp.eq.s32.totalorder %s42, 1
      %p290 = por %p288, %p289
      %p292 = scmp.ne.s32.totalorder %s277, %s291
      %p293 = scmp.eq.s32.totalorder %s42, 0
      %p294 = por %p292, %p293
      %s296 = sadd.s32 %s295, 1
      %p299 = scmp.eq.s32.totalorder %s36, 1
      %p300 = scmp.ne.s32.totalorder %s295, %s297
      %p301 = scmp.eq.s32.totalorder %s36, 0
      %p302 = por %p300, %p301
      %p303 = scmp.ne.s32.totalorder %s295, %s297
      %p304 = scmp.eq.s32.totalorder %s41, 1
      %p305 = por %p303, %p304
      %p306 = scmp.ne.s32.totalorder %s297, %s298
      %p307 = scmp.eq.s32.totalorder %s41, 0
      %p308 = por %p306, %p307
      %p309 = scmp.ne.s32.totalorder %s297, %s298
      %p310 = scmp.eq.s32.totalorder %s42, 1
      %p311 = por %p309, %p310
      %p313 = scmp.ne.s32.totalorder %s298, %s312
      %p314 = scmp.eq.s32.totalorder %s42, 0
      %p315 = por %p313, %p314
      %s317 = sadd.s32 %s316, 1
      %p320 = scmp.eq.s32.totalorder %s36, 1
      %p321 = scmp.ne.s32.totalorder %s316, %s318
      %p322 = scmp.eq.s32.totalorder %s36, 0
      %p323 = por %p321, %p322
      %p324 = scmp.ne.s32.totalorder %s316, %s318
      %p325 = scmp.eq.s32.totalorder %s41, 1
      %p326 = por %p324, %p325
      %p327 = scmp.ne.s32.totalorder %s318, %s319
      %p328 = scmp.eq.s32.totalorder %s41, 0
      %p329 = por %p327, %p328
      %p330 = scmp.ne.s32.totalorder %s318, %s319
      %p331 = scmp.eq.s32.totalorder %s42, 1
      %p332 = por %p330, %p331
      %p334 = scmp.ne.s32.totalorder %s319, %s333
      %p335 = scmp.eq.s32.totalorder %s42, 0
      %p336 = por %p334, %p335
      %s337 = ssub.s32 %s36, %s43
      %p338 = scmp.eq.s32.totalorder %s337, 0
      %s340 = sadd.s32 %s339, 1
      %s341 = scalar_select %p338, %s339, %s340
      %p344 = pneg %p338
      %p345 = scmp.eq.s32.totalorder %s36, 1
      %p346 = por %p344, %p345
      %p347 = scmp.ne.s32.totalorder %s339, %s342
      %p348 = scmp.eq.s32.totalorder %s36, 0
      %p349 = por %p347, %p348
      %p350 = scmp.ne.s32.totalorder %s339, %s342
      %p351 = scmp.eq.s32.totalorder %s41, 1
      %p352 = por %p350, %p351
      %p353 = scmp.ne.s32.totalorder %s342, %s343
      %p354 = scmp.eq.s32.totalorder %s41, 0
      %p355 = por %p353, %p354
      %p356 = scmp.ne.s32.totalorder %s342, %s343
      %p357 = scmp.eq.s32.totalorder %s42, 1
      %p358 = por %p356, %p357
      %p360 = scmp.ne.s32.totalorder %s343, %s359
      %p361 = scmp.eq.s32.totalorder %s42, 0
      %p362 = por %p360, %p361
      %p363 = scmp.le.s32.totalorder 1, %s36
      %p364 = scmp.lt.s32.totalorder %s36, 3
      %p365 = pnand %p363, %p364
      %p366 = pneg %p365
      // Predicated region
      $region9: #{tpu_custom_call.1} parent=5 // pred_check
        _
      $region10: #{tpu_custom_call.1} parent=5 // pred_check_branch
        %368 = sbr.rel (%p365) target = $region12
      $region11: #{tpu_custom_call.1} parent=5 // pred_region
        %s369 = ssub.s32 %s36, 1
        // Predicated region
        $region13: #{tpu_custom_call.1} parent=11 // pred_check
          %p370 = pneg %p57
        $region14: #{tpu_custom_call.1} parent=11 // pred_check_branch
          %372 = sbr.rel (%p370) target = $region16
        $region15: #{tpu_custom_call.1} parent=11 // pred_region
          _
        $region16: #{tpu_custom_call.1} parent=11 // pred_fallthru
          _
        // Predicated region
        $region17: #{tpu_custom_call.1} parent=11 // pred_check
          %p373 = pneg %p182
        $region18: #{tpu_custom_call.1} parent=11 // pred_check_branch
          %375 = sbr.rel (%p373) target = $region20
        $region19: #{tpu_custom_call.1} parent=11 // pred_region
          %s377 = ssub.s32 512, 512
          %378 = vsyncadd [#allocation10], %s377
          %s379 = sshll.u32 [#allocation11], 4
          %s380 = int_to_ptr.vmem [resolvable:$true] %s379
          %385 = dma.hbm_to_vmem [thread:$0]  %s5, 512, %s380, [#allocation10], 128, 128, 8
        $region20: #{tpu_custom_call.1} parent=11 // pred_fallthru
          _
        // Predicated region
        $region21: #{tpu_custom_call.1} parent=11 // pred_check
          %p386 = pneg %p203
        $region22: #{tpu_custom_call.1} parent=11 // pred_check_branch
          %388 = sbr.rel (%p386) target = $region24
        $region23: #{tpu_custom_call.1} parent=11 // pred_region
          %s390 = ssub.s32 16, 16
          %391 = vsyncadd [#allocation13], %s390
          %s393 = sshll.u32 [#allocation12], 4
          %s394 = int_to_ptr.vmem [resolvable:$true] %s393
          %396 = dma.hbm_to_vmem [thread:$0]  %s6, 16, %s394, [#allocation13]
        $region24: #{tpu_custom_call.1} parent=11 // pred_fallthru
          _
        // Predicated region
        $region25: #{tpu_custom_call.1} parent=11 // pred_check
          %p397 = pneg %p224
        $region26: #{tpu_custom_call.1} parent=11 // pred_check_branch
          %399 = sbr.rel (%p397) target = $region28
        $region27: #{tpu_custom_call.1} parent=11 // pred_region
          %s401 = ssub.s32 512, 512
          %402 = vsyncadd [#allocation13], %s401
          %s403 = sshll.u32 [#allocation14], 4
          %s404 = int_to_ptr.vmem [resolvable:$true] %s403
          %409 = dma.hbm_to_vmem [thread:$0]  %s7, 512, %s404, [#allocation13], 128, 128, 8
        $region28: #{tpu_custom_call.1} parent=11 // pred_fallthru
          _
        // Predicated region
        $region29: #{tpu_custom_call.1} parent=11 // pred_check
          %p410 = pneg %p245
        $region30: #{tpu_custom_call.1} parent=11 // pred_check_branch
          %412 = sbr.rel (%p410) target = $region32
        $region31: #{tpu_custom_call.1} parent=11 // pred_region
          %s414 = ssub.s32 16, 16
          %415 = vsyncadd [#allocation16], %s414
          %s417 = sshll.u32 [#allocation15], 4
          %s418 = int_to_ptr.vmem [resolvable:$true] %s417
          %420 = dma.hbm_to_vmem [thread:$0]  %s8, 16, %s418, [#allocation16]
        $region32: #{tpu_custom_call.1} parent=11 // pred_fallthru
          _
        // Predicated region
        $region33: #{tpu_custom_call.1} parent=11 // pred_check
          %p421 = pneg %p266
        $region34: #{tpu_custom_call.1} parent=11 // pred_check_branch
          %423 = sbr.rel (%p421) target = $region36
        $region35: #{tpu_custom_call.1} parent=11 // pred_region
          %s425 = ssub.s32 512, 512
          %426 = vsyncadd [#allocation16], %s425
          %s427 = sshll.u32 [#allocation17], 4
          %s428 = int_to_ptr.vmem [resolvable:$true] %s427
          %433 = dma.hbm_to_vmem [thread:$0]  %s9, 512, %s428, [#allocation16], 128, 128, 8
        $region36: #{tpu_custom_call.1} parent=11 // pred_fallthru
          _
        // Predicated region
        $region37: #{tpu_custom_call.1} parent=11 // pred_check
          %p434 = pneg %p287
        $region38: #{tpu_custom_call.1} parent=11 // pred_check_branch
          %436 = sbr.rel (%p434) target = $region40
        $region39: #{tpu_custom_call.1} parent=11 // pred_region
          %s438 = ssub.s32 16, 16
          %439 = vsyncadd [#allocation19], %s438
          %s441 = sshll.u32 [#allocation18], 4
          %s442 = int_to_ptr.vmem [resolvable:$true] %s441
          %444 = dma.hbm_to_vmem [thread:$0]  %s10, 16, %s442, [#allocation19]
        $region40: #{tpu_custom_call.1} parent=11 // pred_fallthru
          _
        // Predicated region
        $region41: #{tpu_custom_call.1} parent=11 // pred_check
          %p445 = pneg %p308
        $region42: #{tpu_custom_call.1} parent=11 // pred_check_branch
          %447 = sbr.rel (%p445) target = $region44
        $region43: #{tpu_custom_call.1} parent=11 // pred_region
          %s449 = ssub.s32 16, 16
          %450 = vsyncadd [#allocation19], %s449
          %s452 = sshll.u32 [#allocation20], 4
          %s453 = int_to_ptr.vmem [resolvable:$true] %s452
          %455 = dma.hbm_to_vmem [thread:$0]  %s11, 16, %s453, [#allocation19]
        $region44: #{tpu_custom_call.1} parent=11 // pred_fallthru
          _
        // Predicated region
        $region45: #{tpu_custom_call.1} parent=11 // pred_check
          %p456 = pneg %p329
        $region46: #{tpu_custom_call.1} parent=11 // pred_check_branch
          %458 = sbr.rel (%p456) target = $region48
        $region47: #{tpu_custom_call.1} parent=11 // pred_region
          %s460 = ssub.s32 16, 16
          %461 = vsyncadd [#allocation22], %s460
          %s463 = sshll.u32 [#allocation21], 4
          %s464 = int_to_ptr.vmem [resolvable:$true] %s463
          %466 = dma.hbm_to_vmem [thread:$0]  %s12, 16, %s464, [#allocation22]
        $region48: #{tpu_custom_call.1} parent=11 // pred_fallthru
          _
      $region12: #{tpu_custom_call.1} parent=5 // pred_fallthru
        _
      %p467 = scmp.lt.s32.totalorder %s36, 2
      // Predicated region
      $region49: #{tpu_custom_call.1} parent=5 // pred_check
        %p468 = pneg %p467
      $region50: #{tpu_custom_call.1} parent=5 // pred_check_branch
        %470 = sbr.rel (%p468) target = $region52
      $region51: #{tpu_custom_call.1} parent=5 // pred_region
        // Predicated region
        $region53: #{tpu_custom_call.1} parent=51 // pred_check
          %p471 = pneg %p77
        $region54: #{tpu_custom_call.1} parent=51 // pred_check_branch
          %473 = sbr.rel (%p471) target = $region56
        $region55: #{tpu_custom_call.1} parent=51 // pred_region
          %s474 = sand.u32 %s67, 1
          %s475 = scalar_lea.sflag [#allocation4], %s474
          %s476 = sand.u32 %s67, 1
          %s477 = smul.addr %s476, 8
          %s478 = scalar_lea.vmem [#allocation3], %s477
          %s480 = ssub.s32 128, 128
          %481 = vsyncadd %s475, %s480
          %s482 = smul.addr %s36, 128
          %s483 = scalar_lea.hbm %s1, %s482
          %s485 = sshll.u32 %s478, 4
          %s486 = int_to_ptr.vmem [resolvable:$true] %s485
          %488 = dma.hbm_to_vmem [thread:$0]  %s483, 128, %s486, %s475
        $region56: #{tpu_custom_call.1} parent=51 // pred_fallthru
          _
        // Predicated region
        $region57: #{tpu_custom_call.1} parent=51 // pred_check
          %p489 = pneg %p103
        $region58: #{tpu_custom_call.1} parent=51 // pred_check_branch
          %491 = sbr.rel (%p489) target = $region60
        $region59: #{tpu_custom_call.1} parent=51 // pred_region
          %s492 = sand.u32 %s36, 1
          %s493 = scalar_lea.sflag [#allocation7], %s492
          %s494 = sand.u32 %s93, 1
          %s495 = smul.addr %s494, 8
          %s496 = scalar_lea.vmem [#allocation6], %s495
          %s498 = ssub.s32 128, 128
          %499 = vsyncadd %s493, %s498
          %s500 = smul.addr %s36, 128
          %s501 = scalar_lea.hbm %s2, %s500
          %s503 = sshll.u32 %s496, 4
          %s504 = int_to_ptr.vmem [resolvable:$true] %s503
          %506 = dma.hbm_to_vmem [thread:$0]  %s501, 128, %s504, %s493
        $region60: #{tpu_custom_call.1} parent=51 // pred_fallthru
          _
        // Predicated region
        $region61: #{tpu_custom_call.1} parent=51 // pred_check
          %p507 = pneg %p129
        $region62: #{tpu_custom_call.1} parent=51 // pred_check_branch
          %509 = sbr.rel (%p507) target = $region64
        $region63: #{tpu_custom_call.1} parent=51 // pred_region
          %s510 = sand.u32 %s36, 1
          %s511 = scalar_lea.sflag [#allocation7], %s510
          %s512 = sand.u32 %s119, 1
          %s513 = smul.addr %s512, 8
          %s514 = scalar_lea.vmem [#allocation8], %s513
          %s516 = ssub.s32 128, 128
          %517 = vsyncadd %s511, %s516
          %s518 = smul.addr %s36, 128
          %s519 = scalar_lea.hbm %s3, %s518
          %s521 = sshll.u32 %s514, 4
          %s522 = int_to_ptr.vmem [resolvable:$true] %s521
          %524 = dma.hbm_to_vmem [thread:$0]  %s519, 128, %s522, %s511
        $region64: #{tpu_custom_call.1} parent=51 // pred_fallthru
          _
        // Predicated region
        $region65: #{tpu_custom_call.1} parent=51 // pred_check
          %p525 = pneg %p155
        $region66: #{tpu_custom_call.1} parent=51 // pred_check_branch
          %527 = sbr.rel (%p525) target = $region68
        $region67: #{tpu_custom_call.1} parent=51 // pred_region
          %s528 = sand.u32 %s36, 1
          %s529 = scalar_lea.sflag [#allocation10], %s528
          %s530 = sand.u32 %s145, 1
          %s531 = smul.addr %s530, 8
          %s532 = scalar_lea.vmem [#allocation9], %s531
          %s534 = ssub.s32 128, 128
          %535 = vsyncadd %s529, %s534
          %s536 = smul.addr %s36, 128
          %s537 = scalar_lea.hbm %s4, %s536
          %s539 = sshll.u32 %s532, 4
          %s540 = int_to_ptr.vmem [resolvable:$true] %s539
          %542 = dma.hbm_to_vmem [thread:$0]  %s537, 128, %s540, %s529
        $region68: #{tpu_custom_call.1} parent=51 // pred_fallthru
          _
      $region52: #{tpu_custom_call.1} parent=5 // pred_fallthru
        _
      %p543 = scmp.le.s32.totalorder 1, %s36
      %p544 = scmp.lt.s32.totalorder %s36, 3
      %p545 = pnand %p543, %p544
      %p546 = pneg %p545
      // Predicated region
      $region69: #{tpu_custom_call.1} parent=5 // pred_check
        _
      $region70: #{tpu_custom_call.1} parent=5 // pred_check_branch
        %548 = sbr.rel (%p545) target = $region72
      $region71: #{tpu_custom_call.1} parent=5 // pred_region
        %s549 = ssub.s32 %s36, 1
        %s550 = sand.u32 %s70, 1
        %s551 = scalar_lea.sflag [#allocation4], %s550
        %s552 = sand.u32 %s70, 1
        %s553 = smul.addr %s552, 8
        %s554 = scalar_lea.vmem [#allocation3], %s553
        // Predicated region
        $region73: #{tpu_custom_call.1} parent=71 // pred_check
          %p555 = pneg %p83
        $region74: #{tpu_custom_call.1} parent=71 // pred_check_branch
          %557 = sbr.rel (%p555) target = $region76
        $region75: #{tpu_custom_call.1} parent=71 // pred_region
          %558 = dma.done %s551, 128
        $region76: #{tpu_custom_call.1} parent=71 // pred_fallthru
          _
        %s559 = sand.u32 %s41, 1
        %s560 = scalar_lea.sflag [#allocation7], %s559
        %s561 = sand.u32 %s96, 1
        %s562 = smul.addr %s561, 8
        %s563 = scalar_lea.vmem [#allocation6], %s562
        // Predicated region
        $region77: #{tpu_custom_call.1} parent=71 // pred_check
          %p564 = pneg %p109
        $region78: #{tpu_custom_call.1} parent=71 // pred_check_branch
          %566 = sbr.rel (%p564) target = $region80
        $region79: #{tpu_custom_call.1} parent=71 // pred_region
          %567 = dma.done %s560, 128
        $region80: #{tpu_custom_call.1} parent=71 // pred_fallthru
          _
        %s568 = sand.u32 %s41, 1
        %s569 = scalar_lea.sflag [#allocation7], %s568
        %s570 = sand.u32 %s122, 1
        %s571 = smul.addr %s570, 8
        %s572 = scalar_lea.vmem [#allocation8], %s571
        // Predicated region
        $region81: #{tpu_custom_call.1} parent=71 // pred_check
          %p573 = pneg %p135
        $region82: #{tpu_custom_call.1} parent=71 // pred_check_branch
          %575 = sbr.rel (%p573) target = $region84
        $region83: #{tpu_custom_call.1} parent=71 // pred_region
          %576 = dma.done %s569, 128
        $region84: #{tpu_custom_call.1} parent=71 // pred_fallthru
          _
        %s577 = sand.u32 %s41, 1
        %s578 = scalar_lea.sflag [#allocation10], %s577
        %s579 = sand.u32 %s148, 1
        %s580 = smul.addr %s579, 8
        %s581 = scalar_lea.vmem [#allocation9], %s580
        // Predicated region
        $region85: #{tpu_custom_call.1} parent=71 // pred_check
          %p582 = pneg %p161
        $region86: #{tpu_custom_call.1} parent=71 // pred_check_branch
          %584 = sbr.rel (%p582) target = $region88
        $region87: #{tpu_custom_call.1} parent=71 // pred_region
          %585 = dma.done %s578, 128
        $region88: #{tpu_custom_call.1} parent=71 // pred_fallthru
          _
        // Predicated region
        $region89: #{tpu_custom_call.1} parent=71 // pred_check
          %p586 = pneg %p182
        $region90: #{tpu_custom_call.1} parent=71 // pred_check_branch
          %588 = sbr.rel (%p586) target = $region92
        $region91: #{tpu_custom_call.1} parent=71 // pred_region
          %589 = dma.done [#allocation10], 512
        $region92: #{tpu_custom_call.1} parent=71 // pred_fallthru
          _
        // Predicated region
        $region93: #{tpu_custom_call.1} parent=71 // pred_check
          %p590 = pneg %p203
        $region94: #{tpu_custom_call.1} parent=71 // pred_check_branch
          %592 = sbr.rel (%p590) target = $region96
        $region95: #{tpu_custom_call.1} parent=71 // pred_region
          %593 = dma.done [#allocation13], 16
        $region96: #{tpu_custom_call.1} parent=71 // pred_fallthru
          _
        // Predicated region
        $region97: #{tpu_custom_call.1} parent=71 // pred_check
          %p594 = pneg %p224
        $region98: #{tpu_custom_call.1} parent=71 // pred_check_branch
          %596 = sbr.rel (%p594) target = $region100
        $region99: #{tpu_custom_call.1} parent=71 // pred_region
          %597 = dma.done [#allocation13], 512
        $region100: #{tpu_custom_call.1} parent=71 // pred_fallthru
          _
        // Predicated region
        $region101: #{tpu_custom_call.1} parent=71 // pred_check
          %p598 = pneg %p245
        $region102: #{tpu_custom_call.1} parent=71 // pred_check_branch
          %600 = sbr.rel (%p598) target = $region104
        $region103: #{tpu_custom_call.1} parent=71 // pred_region
          %601 = dma.done [#allocation16], 16
        $region104: #{tpu_custom_call.1} parent=71 // pred_fallthru
          _
        // Predicated region
        $region105: #{tpu_custom_call.1} parent=71 // pred_check
          %p602 = pneg %p266
        $region106: #{tpu_custom_call.1} parent=71 // pred_check_branch
          %604 = sbr.rel (%p602) target = $region108
        $region107: #{tpu_custom_call.1} parent=71 // pred_region
          %605 = dma.done [#allocation16], 512
        $region108: #{tpu_custom_call.1} parent=71 // pred_fallthru
          _
        // Predicated region
        $region109: #{tpu_custom_call.1} parent=71 // pred_check
          %p606 = pneg %p287
        $region110: #{tpu_custom_call.1} parent=71 // pred_check_branch
          %608 = sbr.rel (%p606) target = $region112
        $region111: #{tpu_custom_call.1} parent=71 // pred_region
          %609 = dma.done [#allocation19], 16
        $region112: #{tpu_custom_call.1} parent=71 // pred_fallthru
          _
        // Predicated region
        $region113: #{tpu_custom_call.1} parent=71 // pred_check
          %p610 = pneg %p308
        $region114: #{tpu_custom_call.1} parent=71 // pred_check_branch
          %612 = sbr.rel (%p610) target = $region116
        $region115: #{tpu_custom_call.1} parent=71 // pred_region
          %613 = dma.done [#allocation19], 16
        $region116: #{tpu_custom_call.1} parent=71 // pred_fallthru
          _
        // Predicated region
        $region117: #{tpu_custom_call.1} parent=71 // pred_check
          %p614 = pneg %p329
        $region118: #{tpu_custom_call.1} parent=71 // pred_check_branch
          %616 = sbr.rel (%p614) target = $region120
        $region119: #{tpu_custom_call.1} parent=71 // pred_region
          %617 = dma.done [#allocation22], 16
        $region120: #{tpu_custom_call.1} parent=71 // pred_fallthru
          _
        %p618 = pneg %p57
        %p619 = pneg %p54
        %s620 = sand.u32 %s70, 1
        %s621 = scalar_lea.sflag [#allocation4], %s620
        %s622 = sand.u32 %s70, 1
        %s623 = smul.addr %s622, 8
        %s624 = scalar_lea.vmem [#allocation3], %s623
        %p625 = pneg %p83
        %p626 = pneg %p80
        %s627 = sand.u32 %s41, 1
        %s628 = scalar_lea.sflag [#allocation7], %s627
        %s629 = sand.u32 %s96, 1
        %s630 = smul.addr %s629, 8
        %s631 = scalar_lea.vmem [#allocation6], %s630
        %p632 = pneg %p109
        %p633 = pneg %p106
        %s634 = sand.u32 %s41, 1
        %s635 = scalar_lea.sflag [#allocation7], %s634
        %s636 = sand.u32 %s122, 1
        %s637 = smul.addr %s636, 8
        %s638 = scalar_lea.vmem [#allocation8], %s637
        %p639 = pneg %p135
        %p640 = pneg %p132
        %s641 = sand.u32 %s41, 1
        %s642 = scalar_lea.sflag [#allocation10], %s641
        %s643 = sand.u32 %s148, 1
        %s644 = smul.addr %s643, 8
        %s645 = scalar_lea.vmem [#allocation9], %s644
        %p646 = pneg %p161
        %p647 = pneg %p158
        %p648 = pneg %p182
        %p649 = pneg %p179
        %p650 = pneg %p203
        %p651 = pneg %p200
        %p652 = pneg %p224
        %p653 = pneg %p221
        %p654 = pneg %p245
        %p655 = pneg %p242
        %p656 = pneg %p266
        %p657 = pneg %p263
        %p658 = pneg %p287
        %p659 = pneg %p284
        %p660 = pneg %p308
        %p661 = pneg %p305
        %p662 = pneg %p329
        %p663 = pneg %p326
        %p664 = pneg %p355
        %p665 = pneg %p352
        %s666 = sand.u32 %s342, 1
        %s667 = scalar_lea.sflag [#allocation5], %s666
        %s668 = sand.u32 %s342, 1
        %s669 = smul.addr %s668, 8
        %s670 = scalar_lea.vmem [#allocation23], %s669
        %s671 = sld [smem:[#allocation2]]
        %v672 = vld [vmem:[%s581] sm:$0xff]
        %vm673 = vcmp.gt.f32.partialorder %v672, 0.0
        %v674 = vld [vmem:[%s554] sm:$0xff]
        %v675 = vld [vmem:[#allocation11] sm:$0xff]
        %v676 = vld [vmem:[#allocation11 + $0x8] sm:$0xff]
        %v677 = vld [vmem:[#allocation11 + $0x10] sm:$0xff]
        %v678 = vld [vmem:[#allocation11 + $0x18] sm:$0xff]
        %v679 = vld [vmem:[#allocation12] sm:$0x1]
        %v681 = vlaneseq
        %v682 = vshrl.u32 %v681, 7
        %v683 = vsub.s32 0, %v682
        %v684 = vrot.slane %v679, %v683
        %vm686 = vcmask 261120
        %v688 = vsel %vm686, %v674, 0
        %690 = vmatprep.subr.mxu0 0.0
        %691 = vmatpush1.msra.mxu0 %v675
        %692 = vmatprep.subr.mxu0 0.0
        %693 = vmatpush1.msra.mxu0 %v676
        %694 = vmatprep.subr.mxu0 0.0
        %695 = vmatpush1.msra.mxu0 %v677
        %696 = vmatprep.subr.mxu0 0.0
        %697 = vmatpush1.msra.mxu0 %v678
        %698 = vmatprep.subr.mxu0 0.0
        %699 = vmatpush1.msra.mxu0 0.0
        %700 = vmatprep.subr.mxu0 0.0
        %701 = vmatpush1.msra.mxu0 0.0
        %702 = vmatprep.subr.mxu0 0.0
        %703 = vmatpush1.msra.mxu0 0.0
        %704 = vmatprep.subr.mxu0 0.0
        %705 = vmatpush1.msra.mxu0 0.0
        %706 = vmatprep.subr.mxu0 0.0
        %707 = vmatpush1.msra.mxu0 0.0
        %708 = vmatprep.subr.mxu0 0.0
        %709 = vmatpush1.msra.mxu0 0.0
        %710 = vmatprep.subr.mxu0 0.0
        %711 = vmatpush1.msra.mxu0 0.0
        %712 = vmatprep.subr.mxu0 0.0
        %713 = vmatpush1.msra.mxu0 0.0
        %714 = vmatprep.subr.mxu0 0.0
        %715 = vmatpush1.msra.mxu0 0.0
        %716 = vmatprep.subr.mxu0 0.0
        %717 = vmatpush1.msra.mxu0 0.0
        %718 = vmatprep.subr.mxu0 0.0
        %719 = vmatpush1.msra.mxu0 0.0
        %720 = vmatprep.subr.mxu0 0.0
        %721 = vmatpush1.msra.mxu0 0.0
        %722 = vmatprep.subr.mxu0 0.0
        %723 = vmatpush1.msra.mxu0 0.0
        %724 = vmatprep.subr.mxu0 0.0
        %725 = vmatpush1.msra.mxu0 0.0
        %726 = vmatprep.subr.mxu0 0.0
        %727 = vmatpush1.msra.mxu0 0.0
        %728 = vmatprep.subr.mxu0 0.0
        %729 = vmatpush1.msra.mxu0 0.0
        %730 = vmatprep.subr.mxu0 0.0
        %731 = vmatpush1.msra.mxu0 0.0
        %732 = vmatprep.subr.mxu0 0.0
        %733 = vmatpush1.msra.mxu0 0.0
        %734 = vmatprep.subr.mxu0 0.0
        %735 = vmatpush1.msra.mxu0 0.0
        %736 = vmatprep.subr.mxu0 0.0
        %737 = vmatpush1.msra.mxu0 0.0
        %738 = vmatprep.subr.mxu0 0.0
        %739 = vmatpush1.msra.mxu0 0.0
        %740 = vmatprep.subr.mxu0 0.0
        %741 = vmatpush1.msra.mxu0 0.0
        %742 = vmatprep.subr.mxu0 0.0
        %743 = vmatpush1.msra.mxu0 0.0
        %744 = vmatprep.subr.mxu0 0.0
        %745 = vmatpush1.msra.mxu0 0.0
        %746 = vmatprep.subr.mxu0 0.0
        %747 = vmatpush1.msra.mxu0 0.0
        %748 = vmatprep.subr.mxu0 0.0
        %749 = vmatpush1.msra.mxu0 0.0
        %750 = vmatprep.subr.mxu0 0.0
        %751 = vmatpush1.msra.mxu0 0.0
        %752 = vmatprep.subr.mxu0 0.0
        %753 = vmatpush1.msra.mxu0 0.0
        %754 = vmatprep.mubr.f32.mxu0 0.0
        %755 = vmatmul.mubr.f32.gmra.mrb[0].mxu0 %v688
        %v756 = vpop.f32.mrb[0].mxu0
        %v757 = vadd.f32 %v684, %v756
        %v758 = vpop.f32.mrb[0].mxu0
        %759 = vdwg.mxu0
        %v760 = vld [vmem:[%s563] sm:$0xff]
        %v761 = vld [vmem:[%s572] sm:$0xff]
        %v762 = vadd.f32 %v760, 1.0
        %v763 = vlog2.pop %v762
        %v764 = vmul.f32 %v763, 0.6931472
        %v765 = vmul.f32 %v764, 0.4342945
        %v766 = vsel %vm673, -1e+09, %v765
        %v767 = vand.u32 2147483647, %v761
        %v768 = vsub.f32 0.0, %v767
        %v769 = vmul.f32 %v768, 1.442695
        %v770 = vpow.pop %v769
        %v771 = vsel %vm673, -1e+09, %v770
        %v772 = vadd.f32 %v771, %v766
        %vm773 = vcmask 64512
        %v774 = vsel %vm773, %v772, -inf
        %775 = vmax.xlane.f32.xlu0 %v774
        %v776 = vpop.xlane.xlu0 %775
        %v777 = vsub.f32 %v772, %v776
        %v778 = vmul.f32 %v777, 1.442695
        %v779 = vpow.pop %v778
        %v780 = vsel %vm773, %v779, 0.0
        %781 = vadd.xlane.f32.xlu0 %v780
        %v782 = vpop.xlane.xlu0 %781
        %v783 = vrcp.pop %v782
        %v784 = vmul.f32 %v779, %v783
        %786 = vrot.lane.b32.xlu0 %v757, 64
        %v787 = vpop.permute.xlu0 %786
        %v790 = vsel %vm773, %v784, 0
        %792 = vmatprep.subr.mxu0 0.0
        %793 = vmatpush1.msra.mxu0 %v787
        %794 = vmatprep.subr.mxu0 0.0
        %795 = vmatpush1.msra.mxu0 0.0
        %796 = vmatprep.subr.mxu0 0.0
        %797 = vmatpush1.msra.mxu0 0.0
        %798 = vmatprep.subr.mxu0 0.0
        %799 = vmatpush1.msra.mxu0 0.0
        %800 = vmatprep.subr.mxu0 0.0
        %801 = vmatpush1.msra.mxu0 0.0
        %802 = vmatprep.subr.mxu0 0.0
        %803 = vmatpush1.msra.mxu0 0.0
        %804 = vmatprep.subr.mxu0 0.0
        %805 = vmatpush1.msra.mxu0 0.0
        %806 = vmatprep.subr.mxu0 0.0
        %807 = vmatpush1.msra.mxu0 0.0
        %808 = vmatprep.subr.mxu0 0.0
        %809 = vmatpush1.msra.mxu0 0.0
        %810 = vmatprep.subr.mxu0 0.0
        %811 = vmatpush1.msra.mxu0 0.0
        %812 = vmatprep.subr.mxu0 0.0
        %813 = vmatpush1.msra.mxu0 0.0
        %814 = vmatprep.subr.mxu0 0.0
        %815 = vmatpush1.msra.mxu0 0.0
        %816 = vmatprep.subr.mxu0 0.0
        %817 = vmatpush1.msra.mxu0 0.0
        %818 = vmatprep.subr.mxu0 0.0
        %819 = vmatpush1.msra.mxu0 0.0
        %820 = vmatprep.subr.mxu0 0.0
        %821 = vmatpush1.msra.mxu0 0.0
        %822 = vmatprep.subr.mxu0 0.0
        %823 = vmatpush1.msra.mxu0 0.0
        %824 = vmatprep.subr.mxu0 0.0
        %825 = vmatpush1.msra.mxu0 0.0
        %826 = vmatprep.subr.mxu0 0.0
        %827 = vmatpush1.msra.mxu0 0.0
        %828 = vmatprep.subr.mxu0 0.0
        %829 = vmatpush1.msra.mxu0 0.0
        %830 = vmatprep.subr.mxu0 0.0
        %831 = vmatpush1.msra.mxu0 0.0
        %832 = vmatprep.subr.mxu0 0.0
        %833 = vmatpush1.msra.mxu0 0.0
        %834 = vmatprep.subr.mxu0 0.0
        %835 = vmatpush1.msra.mxu0 0.0
        %836 = vmatprep.subr.mxu0 0.0
        %837 = vmatpush1.msra.mxu0 0.0
        %838 = vmatprep.subr.mxu0 0.0
        %839 = vmatpush1.msra.mxu0 0.0
        %840 = vmatprep.subr.mxu0 0.0
        %841 = vmatpush1.msra.mxu0 0.0
        %842 = vmatprep.subr.mxu0 0.0
        %843 = vmatpush1.msra.mxu0 0.0
        %844 = vmatprep.subr.mxu0 0.0
        %845 = vmatpush1.msra.mxu0 0.0
        %846 = vmatprep.subr.mxu0 0.0
        %847 = vmatpush1.msra.mxu0 0.0
        %848 = vmatprep.subr.mxu0 0.0
        %849 = vmatpush1.msra.mxu0 0.0
        %850 = vmatprep.subr.mxu0 0.0
        %851 = vmatpush1.msra.mxu0 0.0
        %852 = vmatprep.subr.mxu0 0.0
        %853 = vmatpush1.msra.mxu0 0.0
        %854 = vmatprep.subr.mxu0 0.0
        %855 = vmatpush1.msra.mxu0 0.0
        %856 = vmatprep.mubr.f32.mxu0 0.0
        %857 = vmatmul.mubr.f32.gmra.mrb[0].mxu0 %v790
        %v858 = vpop.f32.mrb[0].mxu0
        %v859 = vadd.f32 0.0, %v858
        %v860 = vpop.f32.mrb[0].mxu0
        %861 = vdwg.mxu0
        %862 = vrot.lane.b32.xlu0 %v757, 96
        %v863 = vpop.permute.xlu0 %862
        %v864 = vsel %vm773, %v757, 0
        %v866 = vsel %vm773, %v863, 0
        %868 = vmatprep.subr.mxu0 0.0
        %869 = vmatpush1.xpose.msra.mxu0 %v866
        %870 = vmatprep.subr.mxu0 0.0
        %871 = vmatpush1.xpose.msra.mxu0 0.0
        %872 = vmatprep.subr.mxu0 0.0
        %873 = vmatpush1.xpose.msra.mxu0 0.0
        %874 = vmatprep.subr.mxu0 0.0
        %875 = vmatpush1.xpose.msra.mxu0 0.0
        %876 = vmatprep.subr.mxu0 0.0
        %877 = vmatpush1.xpose.msra.mxu0 0.0
        %878 = vmatprep.subr.mxu0 0.0
        %879 = vmatpush1.xpose.msra.mxu0 0.0
        %880 = vmatprep.subr.mxu0 0.0
        %881 = vmatpush1.xpose.msra.mxu0 0.0
        %882 = vmatprep.subr.mxu0 0.0
        %883 = vmatpush1.xpose.msra.mxu0 0.0
        %884 = vmatprep.subr.mxu0 0.0
        %885 = vmatpush1.xpose.msra.mxu0 0.0
        %886 = vmatprep.subr.mxu0 0.0
        %887 = vmatpush1.xpose.msra.mxu0 0.0
        %888 = vmatprep.subr.mxu0 0.0
        %889 = vmatpush1.xpose.msra.mxu0 0.0
        %890 = vmatprep.subr.mxu0 0.0
        %891 = vmatpush1.xpose.msra.mxu0 0.0
        %892 = vmatprep.subr.mxu0 0.0
        %893 = vmatpush1.xpose.msra.mxu0 0.0
        %894 = vmatprep.subr.mxu0 0.0
        %895 = vmatpush1.xpose.msra.mxu0 0.0
        %896 = vmatprep.subr.mxu0 0.0
        %897 = vmatpush1.xpose.msra.mxu0 0.0
        %898 = vmatprep.subr.mxu0 0.0
        %899 = vmatpush1.xpose.msra.mxu0 0.0
        %900 = vmatprep.subr.mxu0 0.0
        %901 = vmatpush1.xpose.msra.mxu0 0.0
        %902 = vmatprep.subr.mxu0 0.0
        %903 = vmatpush1.xpose.msra.mxu0 0.0
        %904 = vmatprep.subr.mxu0 0.0
        %905 = vmatpush1.xpose.msra.mxu0 0.0
        %906 = vmatprep.subr.mxu0 0.0
        %907 = vmatpush1.xpose.msra.mxu0 0.0
        %908 = vmatprep.subr.mxu0 0.0
        %909 = vmatpush1.xpose.msra.mxu0 0.0
        %910 = vmatprep.subr.mxu0 0.0
        %911 = vmatpush1.xpose.msra.mxu0 0.0
        %912 = vmatprep.subr.mxu0 0.0
        %913 = vmatpush1.xpose.msra.mxu0 0.0
        %914 = vmatprep.subr.mxu0 0.0
        %915 = vmatpush1.xpose.msra.mxu0 0.0
        %916 = vmatprep.subr.mxu0 0.0
        %917 = vmatpush1.xpose.msra.mxu0 0.0
        %918 = vmatprep.subr.mxu0 0.0
        %919 = vmatpush1.xpose.msra.mxu0 0.0
        %920 = vmatprep.subr.mxu0 0.0
        %921 = vmatpush1.xpose.msra.mxu0 0.0
        %922 = vmatprep.subr.mxu0 0.0
        %923 = vmatpush1.xpose.msra.mxu0 0.0
        %924 = vmatprep.subr.mxu0 0.0
        %925 = vmatpush1.xpose.msra.mxu0 0.0
        %926 = vmatprep.subr.mxu0 0.0
        %927 = vmatpush1.xpose.msra.mxu0 0.0
        %928 = vmatprep.subr.mxu0 0.0
        %929 = vmatpush1.xpose.msra.mxu0 0.0
        %930 = vmatprep.subr.mxu0 0.0
        %931 = vmatpush1.xpose.msra.mxu0 0.0
        %932 = vmatprep.mubr.f32.mxu0 0.0
        %933 = vmatmul.mubr.f32.gmra.mrb[0].mxu0 %v864
        %v934 = vpop.f32.mrb[0].mxu0
        %v935 = vadd.f32 0.0, %v934
        %v936 = vpop.f32.mrb[0].mxu0
        %937 = vdwg.mxu0
        %v938 = vmul.f32 %v935, 0.35355338
        %v939 = vsel %vm673, -1e+09, %v938
        %v940 = vsel %vm773, %v939, -inf
        %941 = vmax.xlane.f32.xlu0 %v940
        %v942 = vpop.xlane.xlu0 %941
        %v943 = vsub.f32 %v939, %v942
        %v944 = vmul.f32 %v943, 1.442695
        %v945 = vpow.pop %v944
        %v946 = vsel %vm773, %v945, 0.0
        %947 = vadd.xlane.f32.xlu0 %v946
        %v948 = vpop.xlane.xlu0 %947
        %v949 = vrcp.pop %v948
        %v950 = vmul.f32 %v945, %v949
        %v952 = vsel %vm773, %v950, 0
        %954 = vmatprep.subr.mxu0 0.0
        %955 = vmatpush1.msra.mxu0 %v787
        %956 = vmatprep.subr.mxu0 0.0
        %957 = vmatpush1.msra.mxu0 0.0
        %958 = vmatprep.subr.mxu0 0.0
        %959 = vmatpush1.msra.mxu0 0.0
        %960 = vmatprep.subr.mxu0 0.0
        %961 = vmatpush1.msra.mxu0 0.0
        %962 = vmatprep.subr.mxu0 0.0
        %963 = vmatpush1.msra.mxu0 0.0
        %964 = vmatprep.subr.mxu0 0.0
        %965 = vmatpush1.msra.mxu0 0.0
        %966 = vmatprep.subr.mxu0 0.0
        %967 = vmatpush1.msra.mxu0 0.0
        %968 = vmatprep.subr.mxu0 0.0
        %969 = vmatpush1.msra.mxu0 0.0
        %970 = vmatprep.subr.mxu0 0.0
        %971 = vmatpush1.msra.mxu0 0.0
        %972 = vmatprep.subr.mxu0 0.0
        %973 = vmatpush1.msra.mxu0 0.0
        %974 = vmatprep.subr.mxu0 0.0
        %975 = vmatpush1.msra.mxu0 0.0
        %976 = vmatprep.subr.mxu0 0.0
        %977 = vmatpush1.msra.mxu0 0.0
        %978 = vmatprep.subr.mxu0 0.0
        %979 = vmatpush1.msra.mxu0 0.0
        %980 = vmatprep.subr.mxu0 0.0
        %981 = vmatpush1.msra.mxu0 0.0
        %982 = vmatprep.subr.mxu0 0.0
        %983 = vmatpush1.msra.mxu0 0.0
        %984 = vmatprep.subr.mxu0 0.0
        %985 = vmatpush1.msra.mxu0 0.0
        %986 = vmatprep.subr.mxu0 0.0
        %987 = vmatpush1.msra.mxu0 0.0
        %988 = vmatprep.subr.mxu0 0.0
        %989 = vmatpush1.msra.mxu0 0.0
        %990 = vmatprep.subr.mxu0 0.0
        %991 = vmatpush1.msra.mxu0 0.0
        %992 = vmatprep.subr.mxu0 0.0
        %993 = vmatpush1.msra.mxu0 0.0
        %994 = vmatprep.subr.mxu0 0.0
        %995 = vmatpush1.msra.mxu0 0.0
        %996 = vmatprep.subr.mxu0 0.0
        %997 = vmatpush1.msra.mxu0 0.0
        %998 = vmatprep.subr.mxu0 0.0
        %999 = vmatpush1.msra.mxu0 0.0
        %1000 = vmatprep.subr.mxu0 0.0
        %1001 = vmatpush1.msra.mxu0 0.0
        %1002 = vmatprep.subr.mxu0 0.0
        %1003 = vmatpush1.msra.mxu0 0.0
        %1004 = vmatprep.subr.mxu0 0.0
        %1005 = vmatpush1.msra.mxu0 0.0
        %1006 = vmatprep.subr.mxu0 0.0
        %1007 = vmatpush1.msra.mxu0 0.0
        %1008 = vmatprep.subr.mxu0 0.0
        %1009 = vmatpush1.msra.mxu0 0.0
        %1010 = vmatprep.subr.mxu0 0.0
        %1011 = vmatpush1.msra.mxu0 0.0
        %1012 = vmatprep.subr.mxu0 0.0
        %1013 = vmatpush1.msra.mxu0 0.0
        %1014 = vmatprep.subr.mxu0 0.0
        %1015 = vmatpush1.msra.mxu0 0.0
        %1016 = vmatprep.subr.mxu0 0.0
        %1017 = vmatpush1.msra.mxu0 0.0
        %1018 = vmatprep.mubr.f32.mxu0 0.0
        %1019 = vmatmul.mubr.f32.gmra.mrb[0].mxu0 %v952
        %v1020 = vpop.f32.mrb[0].mxu0
        %v1021 = vadd.f32 0.0, %v1020
        %v1022 = vpop.f32.mrb[0].mxu0
        %1023 = vdwg.mxu0
        %1024 = vrot.lane.b32.xlu0 %v757, 120
        %v1025 = vpop.permute.xlu0 %1024
        %1026 = vrot.lane.b32.xlu0 %v757, 88
        %v1027 = vpop.permute.xlu0 %1026
        %v1028 = vsel %vm773, %v1025, 0
        %v1030 = vsel %vm773, %v1027, 0
        %1032 = vmatprep.subr.mxu0 0.0
        %1033 = vmatpush1.xpose.msra.mxu0 %v1030
        %1034 = vmatprep.subr.mxu0 0.0
        %1035 = vmatpush1.xpose.msra.mxu0 0.0
        %1036 = vmatprep.subr.mxu0 0.0
        %1037 = vmatpush1.xpose.msra.mxu0 0.0
        %1038 = vmatprep.subr.mxu0 0.0
        %1039 = vmatpush1.xpose.msra.mxu0 0.0
        %1040 = vmatprep.subr.mxu0 0.0
        %1041 = vmatpush1.xpose.msra.mxu0 0.0
        %1042 = vmatprep.subr.mxu0 0.0
        %1043 = vmatpush1.xpose.msra.mxu0 0.0
        %1044 = vmatprep.subr.mxu0 0.0
        %1045 = vmatpush1.xpose.msra.mxu0 0.0
        %1046 = vmatprep.subr.mxu0 0.0
        %1047 = vmatpush1.xpose.msra.mxu0 0.0
        %1048 = vmatprep.subr.mxu0 0.0
        %1049 = vmatpush1.xpose.msra.mxu0 0.0
        %1050 = vmatprep.subr.mxu0 0.0
        %1051 = vmatpush1.xpose.msra.mxu0 0.0
        %1052 = vmatprep.subr.mxu0 0.0
        %1053 = vmatpush1.xpose.msra.mxu0 0.0
        %1054 = vmatprep.subr.mxu0 0.0
        %1055 = vmatpush1.xpose.msra.mxu0 0.0
        %1056 = vmatprep.subr.mxu0 0.0
        %1057 = vmatpush1.xpose.msra.mxu0 0.0
        %1058 = vmatprep.subr.mxu0 0.0
        %1059 = vmatpush1.xpose.msra.mxu0 0.0
        %1060 = vmatprep.subr.mxu0 0.0
        %1061 = vmatpush1.xpose.msra.mxu0 0.0
        %1062 = vmatprep.subr.mxu0 0.0
        %1063 = vmatpush1.xpose.msra.mxu0 0.0
        %1064 = vmatprep.subr.mxu0 0.0
        %1065 = vmatpush1.xpose.msra.mxu0 0.0
        %1066 = vmatprep.subr.mxu0 0.0
        %1067 = vmatpush1.xpose.msra.mxu0 0.0
        %1068 = vmatprep.subr.mxu0 0.0
        %1069 = vmatpush1.xpose.msra.mxu0 0.0
        %1070 = vmatprep.subr.mxu0 0.0
        %1071 = vmatpush1.xpose.msra.mxu0 0.0
        %1072 = vmatprep.subr.mxu0 0.0
        %1073 = vmatpush1.xpose.msra.mxu0 0.0
        %1074 = vmatprep.subr.mxu0 0.0
        %1075 = vmatpush1.xpose.msra.mxu0 0.0
        %1076 = vmatprep.subr.mxu0 0.0
        %1077 = vmatpush1.xpose.msra.mxu0 0.0
        %1078 = vmatprep.subr.mxu0 0.0
        %1079 = vmatpush1.xpose.msra.mxu0 0.0
        %1080 = vmatprep.subr.mxu0 0.0
        %1081 = vmatpush1.xpose.msra.mxu0 0.0
        %1082 = vmatprep.subr.mxu0 0.0
        %1083 = vmatpush1.xpose.msra.mxu0 0.0
        %1084 = vmatprep.subr.mxu0 0.0
        %1085 = vmatpush1.xpose.msra.mxu0 0.0
        %1086 = vmatprep.subr.mxu0 0.0
        %1087 = vmatpush1.xpose.msra.mxu0 0.0
        %1088 = vmatprep.subr.mxu0 0.0
        %1089 = vmatpush1.xpose.msra.mxu0 0.0
        %1090 = vmatprep.subr.mxu0 0.0
        %1091 = vmatpush1.xpose.msra.mxu0 0.0
        %1092 = vmatprep.subr.mxu0 0.0
        %1093 = vmatpush1.xpose.msra.mxu0 0.0
        %1094 = vmatprep.subr.mxu0 0.0
        %1095 = vmatpush1.xpose.msra.mxu0 0.0
        %1096 = vmatprep.mubr.f32.mxu0 0.0
        %1097 = vmatmul.mubr.f32.gmra.mrb[0].mxu0 %v1028
        %v1098 = vpop.f32.mrb[0].mxu0
        %v1099 = vadd.f32 0.0, %v1098
        %v1100 = vpop.f32.mrb[0].mxu0
        %1101 = vdwg.mxu0
        %v1102 = vmul.f32 %v1099, 0.35355338
        %v1103 = vsel %vm673, -1e+09, %v1102
        %v1104 = vsel %vm773, %v1103, -inf
        %1105 = vmax.xlane.f32.xlu0 %v1104
        %v1106 = vpop.xlane.xlu0 %1105
        %v1107 = vsub.f32 %v1103, %v1106
        %v1108 = vmul.f32 %v1107, 1.442695
        %v1109 = vpow.pop %v1108
        %v1110 = vsel %vm773, %v1109, 0.0
        %1111 = vadd.xlane.f32.xlu0 %v1110
        %v1112 = vpop.xlane.xlu0 %1111
        %v1113 = vrcp.pop %v1112
        %v1114 = vmul.f32 %v1109, %v1113
        %1115 = vrot.lane.b32.xlu0 %v757, 56
        %v1116 = vpop.permute.xlu0 %1115
        %v1119 = vsel %vm773, %v1114, 0
        %1121 = vmatprep.subr.mxu0 0.0
        %1122 = vmatpush1.msra.mxu0 %v1116
        %1123 = vmatprep.subr.mxu0 0.0
        %1124 = vmatpush1.msra.mxu0 0.0
        %1125 = vmatprep.subr.mxu0 0.0
        %1126 = vmatpush1.msra.mxu0 0.0
        %1127 = vmatprep.subr.mxu0 0.0
        %1128 = vmatpush1.msra.mxu0 0.0
        %1129 = vmatprep.subr.mxu0 0.0
        %1130 = vmatpush1.msra.mxu0 0.0
        %1131 = vmatprep.subr.mxu0 0.0
        %1132 = vmatpush1.msra.mxu0 0.0
        %1133 = vmatprep.subr.mxu0 0.0
        %1134 = vmatpush1.msra.mxu0 0.0
        %1135 = vmatprep.subr.mxu0 0.0
        %1136 = vmatpush1.msra.mxu0 0.0
        %1137 = vmatprep.subr.mxu0 0.0
        %1138 = vmatpush1.msra.mxu0 0.0
        %1139 = vmatprep.subr.mxu0 0.0
        %1140 = vmatpush1.msra.mxu0 0.0
        %1141 = vmatprep.subr.mxu0 0.0
        %1142 = vmatpush1.msra.mxu0 0.0
        %1143 = vmatprep.subr.mxu0 0.0
        %1144 = vmatpush1.msra.mxu0 0.0
        %1145 = vmatprep.subr.mxu0 0.0
        %1146 = vmatpush1.msra.mxu0 0.0
        %1147 = vmatprep.subr.mxu0 0.0
        %1148 = vmatpush1.msra.mxu0 0.0
        %1149 = vmatprep.subr.mxu0 0.0
        %1150 = vmatpush1.msra.mxu0 0.0
        %1151 = vmatprep.subr.mxu0 0.0
        %1152 = vmatpush1.msra.mxu0 0.0
        %1153 = vmatprep.subr.mxu0 0.0
        %1154 = vmatpush1.msra.mxu0 0.0
        %1155 = vmatprep.subr.mxu0 0.0
        %1156 = vmatpush1.msra.mxu0 0.0
        %1157 = vmatprep.subr.mxu0 0.0
        %1158 = vmatpush1.msra.mxu0 0.0
        %1159 = vmatprep.subr.mxu0 0.0
        %1160 = vmatpush1.msra.mxu0 0.0
        %1161 = vmatprep.subr.mxu0 0.0
        %1162 = vmatpush1.msra.mxu0 0.0
        %1163 = vmatprep.subr.mxu0 0.0
        %1164 = vmatpush1.msra.mxu0 0.0
        %1165 = vmatprep.subr.mxu0 0.0
        %1166 = vmatpush1.msra.mxu0 0.0
        %1167 = vmatprep.subr.mxu0 0.0
        %1168 = vmatpush1.msra.mxu0 0.0
        %1169 = vmatprep.subr.mxu0 0.0
        %1170 = vmatpush1.msra.mxu0 0.0
        %1171 = vmatprep.subr.mxu0 0.0
        %1172 = vmatpush1.msra.mxu0 0.0
        %1173 = vmatprep.subr.mxu0 0.0
        %1174 = vmatpush1.msra.mxu0 0.0
        %1175 = vmatprep.subr.mxu0 0.0
        %1176 = vmatpush1.msra.mxu0 0.0
        %1177 = vmatprep.subr.mxu0 0.0
        %1178 = vmatpush1.msra.mxu0 0.0
        %1179 = vmatprep.subr.mxu0 0.0
        %1180 = vmatpush1.msra.mxu0 0.0
        %1181 = vmatprep.subr.mxu0 0.0
        %1182 = vmatpush1.msra.mxu0 0.0
        %1183 = vmatprep.subr.mxu0 0.0
        %1184 = vmatpush1.msra.mxu0 0.0
        %1185 = vmatprep.mubr.f32.mxu0 0.0
        %1186 = vmatmul.mubr.f32.gmra.mrb[0].mxu0 %v1119
        %v1187 = vpop.f32.mrb[0].mxu0
        %v1188 = vadd.f32 0.0, %v1187
        %v1189 = vpop.f32.mrb[0].mxu0
        %1190 = vdwg.mxu0
        %1191 = vrot.lane.b32.xlu0 %v757, 112
        %v1192 = vpop.permute.xlu0 %1191
        %1193 = vrot.lane.b32.xlu0 %v757, 80
        %v1194 = vpop.permute.xlu0 %1193
        %v1195 = vsel %vm773, %v1192, 0
        %v1197 = vsel %vm773, %v1194, 0
        %1199 = vmatprep.subr.mxu0 0.0
        %1200 = vmatpush1.xpose.msra.mxu0 %v1197
        %1201 = vmatprep.subr.mxu0 0.0
        %1202 = vmatpush1.xpose.msra.mxu0 0.0
        %1203 = vmatprep.subr.mxu0 0.0
        %1204 = vmatpush1.xpose.msra.mxu0 0.0
        %1205 = vmatprep.subr.mxu0 0.0
        %1206 = vmatpush1.xpose.msra.mxu0 0.0
        %1207 = vmatprep.subr.mxu0 0.0
        %1208 = vmatpush1.xpose.msra.mxu0 0.0
        %1209 = vmatprep.subr.mxu0 0.0
        %1210 = vmatpush1.xpose.msra.mxu0 0.0
        %1211 = vmatprep.subr.mxu0 0.0
        %1212 = vmatpush1.xpose.msra.mxu0 0.0
        %1213 = vmatprep.subr.mxu0 0.0
        %1214 = vmatpush1.xpose.msra.mxu0 0.0
        %1215 = vmatprep.subr.mxu0 0.0
        %1216 = vmatpush1.xpose.msra.mxu0 0.0
        %1217 = vmatprep.subr.mxu0 0.0
        %1218 = vmatpush1.xpose.msra.mxu0 0.0
        %1219 = vmatprep.subr.mxu0 0.0
        %1220 = vmatpush1.xpose.msra.mxu0 0.0
        %1221 = vmatprep.subr.mxu0 0.0
        %1222 = vmatpush1.xpose.msra.mxu0 0.0
        %1223 = vmatprep.subr.mxu0 0.0
        %1224 = vmatpush1.xpose.msra.mxu0 0.0
        %1225 = vmatprep.subr.mxu0 0.0
        %1226 = vmatpush1.xpose.msra.mxu0 0.0
        %1227 = vmatprep.subr.mxu0 0.0
        %1228 = vmatpush1.xpose.msra.mxu0 0.0
        %1229 = vmatprep.subr.mxu0 0.0
        %1230 = vmatpush1.xpose.msra.mxu0 0.0
        %1231 = vmatprep.subr.mxu0 0.0
        %1232 = vmatpush1.xpose.msra.mxu0 0.0
        %1233 = vmatprep.subr.mxu0 0.0
        %1234 = vmatpush1.xpose.msra.mxu0 0.0
        %1235 = vmatprep.subr.mxu0 0.0
        %1236 = vmatpush1.xpose.msra.mxu0 0.0
        %1237 = vmatprep.subr.mxu0 0.0
        %1238 = vmatpush1.xpose.msra.mxu0 0.0
        %1239 = vmatprep.subr.mxu0 0.0
        %1240 = vmatpush1.xpose.msra.mxu0 0.0
        %1241 = vmatprep.subr.mxu0 0.0
        %1242 = vmatpush1.xpose.msra.mxu0 0.0
        %1243 = vmatprep.subr.mxu0 0.0
        %1244 = vmatpush1.xpose.msra.mxu0 0.0
        %1245 = vmatprep.subr.mxu0 0.0
        %1246 = vmatpush1.xpose.msra.mxu0 0.0
        %1247 = vmatprep.subr.mxu0 0.0
        %1248 = vmatpush1.xpose.msra.mxu0 0.0
        %1249 = vmatprep.subr.mxu0 0.0
        %1250 = vmatpush1.xpose.msra.mxu0 0.0
        %1251 = vmatprep.subr.mxu0 0.0
        %1252 = vmatpush1.xpose.msra.mxu0 0.0
        %1253 = vmatprep.subr.mxu0 0.0
        %1254 = vmatpush1.xpose.msra.mxu0 0.0
        %1255 = vmatprep.subr.mxu0 0.0
        %1256 = vmatpush1.xpose.msra.mxu0 0.0
        %1257 = vmatprep.subr.mxu0 0.0
        %1258 = vmatpush1.xpose.msra.mxu0 0.0
        %1259 = vmatprep.subr.mxu0 0.0
        %1260 = vmatpush1.xpose.msra.mxu0 0.0
        %1261 = vmatprep.subr.mxu0 0.0
        %1262 = vmatpush1.xpose.msra.mxu0 0.0
        %1263 = vmatprep.mubr.f32.mxu0 0.0
        %1264 = vmatmul.mubr.f32.gmra.mrb[0].mxu0 %v1195
        %v1265 = vpop.f32.mrb[0].mxu0
        %v1266 = vadd.f32 0.0, %v1265
        %v1267 = vpop.f32.mrb[0].mxu0
        %1268 = vdwg.mxu0
        %v1269 = vmul.f32 %v1266, 0.35355338
        %v1270 = vsel %vm673, -1e+09, %v1269
        %v1271 = vsel %vm773, %v1270, -inf
        %1272 = vmax.xlane.f32.xlu0 %v1271
        %v1273 = vpop.xlane.xlu0 %1272
        %v1274 = vsub.f32 %v1270, %v1273
        %v1275 = vmul.f32 %v1274, 1.442695
        %v1276 = vpow.pop %v1275
        %v1277 = vsel %vm773, %v1276, 0.0
        %1278 = vadd.xlane.f32.xlu0 %v1277
        %v1279 = vpop.xlane.xlu0 %1278
        %v1280 = vrcp.pop %v1279
        %v1281 = vmul.f32 %v1276, %v1280
        %1282 = vrot.lane.b32.xlu0 %v757, 48
        %v1283 = vpop.permute.xlu0 %1282
        %v1286 = vsel %vm773, %v1281, 0
        %1288 = vmatprep.subr.mxu0 0.0
        %1289 = vmatpush1.msra.mxu0 %v1283
        %1290 = vmatprep.subr.mxu0 0.0
        %1291 = vmatpush1.msra.mxu0 0.0
        %1292 = vmatprep.subr.mxu0 0.0
        %1293 = vmatpush1.msra.mxu0 0.0
        %1294 = vmatprep.subr.mxu0 0.0
        %1295 = vmatpush1.msra.mxu0 0.0
        %1296 = vmatprep.subr.mxu0 0.0
        %1297 = vmatpush1.msra.mxu0 0.0
        %1298 = vmatprep.subr.mxu0 0.0
        %1299 = vmatpush1.msra.mxu0 0.0
        %1300 = vmatprep.subr.mxu0 0.0
        %1301 = vmatpush1.msra.mxu0 0.0
        %1302 = vmatprep.subr.mxu0 0.0
        %1303 = vmatpush1.msra.mxu0 0.0
        %1304 = vmatprep.subr.mxu0 0.0
        %1305 = vmatpush1.msra.mxu0 0.0
        %1306 = vmatprep.subr.mxu0 0.0
        %1307 = vmatpush1.msra.mxu0 0.0
        %1308 = vmatprep.subr.mxu0 0.0
        %1309 = vmatpush1.msra.mxu0 0.0
        %1310 = vmatprep.subr.mxu0 0.0
        %1311 = vmatpush1.msra.mxu0 0.0
        %1312 = vmatprep.subr.mxu0 0.0
        %1313 = vmatpush1.msra.mxu0 0.0
        %1314 = vmatprep.subr.mxu0 0.0
        %1315 = vmatpush1.msra.mxu0 0.0
        %1316 = vmatprep.subr.mxu0 0.0
        %1317 = vmatpush1.msra.mxu0 0.0
        %1318 = vmatprep.subr.mxu0 0.0
        %1319 = vmatpush1.msra.mxu0 0.0
        %1320 = vmatprep.subr.mxu0 0.0
        %1321 = vmatpush1.msra.mxu0 0.0
        %1322 = vmatprep.subr.mxu0 0.0
        %1323 = vmatpush1.msra.mxu0 0.0
        %1324 = vmatprep.subr.mxu0 0.0
        %1325 = vmatpush1.msra.mxu0 0.0
        %1326 = vmatprep.subr.mxu0 0.0
        %1327 = vmatpush1.msra.mxu0 0.0
        %1328 = vmatprep.subr.mxu0 0.0
        %1329 = vmatpush1.msra.mxu0 0.0
        %1330 = vmatprep.subr.mxu0 0.0
        %1331 = vmatpush1.msra.mxu0 0.0
        %1332 = vmatprep.subr.mxu0 0.0
        %1333 = vmatpush1.msra.mxu0 0.0
        %1334 = vmatprep.subr.mxu0 0.0
        %1335 = vmatpush1.msra.mxu0 0.0
        %1336 = vmatprep.subr.mxu0 0.0
        %1337 = vmatpush1.msra.mxu0 0.0
        %1338 = vmatprep.subr.mxu0 0.0
        %1339 = vmatpush1.msra.mxu0 0.0
        %1340 = vmatprep.subr.mxu0 0.0
        %1341 = vmatpush1.msra.mxu0 0.0
        %1342 = vmatprep.subr.mxu0 0.0
        %1343 = vmatpush1.msra.mxu0 0.0
        %1344 = vmatprep.subr.mxu0 0.0
        %1345 = vmatpush1.msra.mxu0 0.0
        %1346 = vmatprep.subr.mxu0 0.0
        %1347 = vmatpush1.msra.mxu0 0.0
        %1348 = vmatprep.subr.mxu0 0.0
        %1349 = vmatpush1.msra.mxu0 0.0
        %1350 = vmatprep.subr.mxu0 0.0
        %1351 = vmatpush1.msra.mxu0 0.0
        %1352 = vmatprep.mubr.f32.mxu0 0.0
        %1353 = vmatmul.mubr.f32.gmra.mrb[0].mxu0 %v1286
        %v1354 = vpop.f32.mrb[0].mxu0
        %v1355 = vadd.f32 0.0, %v1354
        %v1356 = vpop.f32.mrb[0].mxu0
        %1357 = vdwg.mxu0
        %1358 = vrot.lane.b32.xlu0 %v757, 104
        %v1359 = vpop.permute.xlu0 %1358
        %1360 = vrot.lane.b32.xlu0 %v757, 72
        %v1361 = vpop.permute.xlu0 %1360
        %v1362 = vsel %vm773, %v1359, 0
        %v1364 = vsel %vm773, %v1361, 0
        %1366 = vmatprep.subr.mxu0 0.0
        %1367 = vmatpush1.xpose.msra.mxu0 %v1364
        %1368 = vmatprep.subr.mxu0 0.0
        %1369 = vmatpush1.xpose.msra.mxu0 0.0
        %1370 = vmatprep.subr.mxu0 0.0
        %1371 = vmatpush1.xpose.msra.mxu0 0.0
        %1372 = vmatprep.subr.mxu0 0.0
        %1373 = vmatpush1.xpose.msra.mxu0 0.0
        %1374 = vmatprep.subr.mxu0 0.0
        %1375 = vmatpush1.xpose.msra.mxu0 0.0
        %1376 = vmatprep.subr.mxu0 0.0
        %1377 = vmatpush1.xpose.msra.mxu0 0.0
        %1378 = vmatprep.subr.mxu0 0.0
        %1379 = vmatpush1.xpose.msra.mxu0 0.0
        %1380 = vmatprep.subr.mxu0 0.0
        %1381 = vmatpush1.xpose.msra.mxu0 0.0
        %1382 = vmatprep.subr.mxu0 0.0
        %1383 = vmatpush1.xpose.msra.mxu0 0.0
        %1384 = vmatprep.subr.mxu0 0.0
        %1385 = vmatpush1.xpose.msra.mxu0 0.0
        %1386 = vmatprep.subr.mxu0 0.0
        %1387 = vmatpush1.xpose.msra.mxu0 0.0
        %1388 = vmatprep.subr.mxu0 0.0
        %1389 = vmatpush1.xpose.msra.mxu0 0.0
        %1390 = vmatprep.subr.mxu0 0.0
        %1391 = vmatpush1.xpose.msra.mxu0 0.0
        %1392 = vmatprep.subr.mxu0 0.0
        %1393 = vmatpush1.xpose.msra.mxu0 0.0
        %1394 = vmatprep.subr.mxu0 0.0
        %1395 = vmatpush1.xpose.msra.mxu0 0.0
        %1396 = vmatprep.subr.mxu0 0.0
        %1397 = vmatpush1.xpose.msra.mxu0 0.0
        %1398 = vmatprep.subr.mxu0 0.0
        %1399 = vmatpush1.xpose.msra.mxu0 0.0
        %1400 = vmatprep.subr.mxu0 0.0
        %1401 = vmatpush1.xpose.msra.mxu0 0.0
        %1402 = vmatprep.subr.mxu0 0.0
        %1403 = vmatpush1.xpose.msra.mxu0 0.0
        %1404 = vmatprep.subr.mxu0 0.0
        %1405 = vmatpush1.xpose.msra.mxu0 0.0
        %1406 = vmatprep.subr.mxu0 0.0
        %1407 = vmatpush1.xpose.msra.mxu0 0.0
        %1408 = vmatprep.subr.mxu0 0.0
        %1409 = vmatpush1.xpose.msra.mxu0 0.0
        %1410 = vmatprep.subr.mxu0 0.0
        %1411 = vmatpush1.xpose.msra.mxu0 0.0
        %1412 = vmatprep.subr.mxu0 0.0
        %1413 = vmatpush1.xpose.msra.mxu0 0.0
        %1414 = vmatprep.subr.mxu0 0.0
        %1415 = vmatpush1.xpose.msra.mxu0 0.0
        %1416 = vmatprep.subr.mxu0 0.0
        %1417 = vmatpush1.xpose.msra.mxu0 0.0
        %1418 = vmatprep.subr.mxu0 0.0
        %1419 = vmatpush1.xpose.msra.mxu0 0.0
        %1420 = vmatprep.subr.mxu0 0.0
        %1421 = vmatpush1.xpose.msra.mxu0 0.0
        %1422 = vmatprep.subr.mxu0 0.0
        %1423 = vmatpush1.xpose.msra.mxu0 0.0
        %1424 = vmatprep.subr.mxu0 0.0
        %1425 = vmatpush1.xpose.msra.mxu0 0.0
        %1426 = vmatprep.subr.mxu0 0.0
        %1427 = vmatpush1.xpose.msra.mxu0 0.0
        %1428 = vmatprep.subr.mxu0 0.0
        %1429 = vmatpush1.xpose.msra.mxu0 0.0
        %1430 = vmatprep.mubr.f32.mxu0 0.0
        %1431 = vmatmul.mubr.f32.gmra.mrb[0].mxu0 %v1362
        %v1432 = vpop.f32.mrb[0].mxu0
        %v1433 = vadd.f32 0.0, %v1432
        %v1434 = vpop.f32.mrb[0].mxu0
        %1435 = vdwg.mxu0
        %v1436 = vmul.f32 %v1433, 0.35355338
        %v1437 = vsel %vm673, -1e+09, %v1436
        %v1438 = vsel %vm773, %v1437, -inf
        %1439 = vmax.xlane.f32.xlu0 %v1438
        %v1440 = vpop.xlane.xlu0 %1439
        %v1441 = vsub.f32 %v1437, %v1440
        %v1442 = vmul.f32 %v1441, 1.442695
        %v1443 = vpow.pop %v1442
        %v1444 = vsel %vm773, %v1443, 0.0
        %1445 = vadd.xlane.f32.xlu0 %v1444
        %v1446 = vpop.xlane.xlu0 %1445
        %v1447 = vrcp.pop %v1446
        %v1448 = vmul.f32 %v1443, %v1447
        %1449 = vrot.lane.b32.xlu0 %v757, 40
        %v1450 = vpop.permute.xlu0 %1449
        %v1453 = vsel %vm773, %v1448, 0
        %1455 = vmatprep.subr.mxu0 0.0
        %1456 = vmatpush1.msra.mxu0 %v1450
        %1457 = vmatprep.subr.mxu0 0.0
        %1458 = vmatpush1.msra.mxu0 0.0
        %1459 = vmatprep.subr.mxu0 0.0
        %1460 = vmatpush1.msra.mxu0 0.0
        %1461 = vmatprep.subr.mxu0 0.0
        %1462 = vmatpush1.msra.mxu0 0.0
        %1463 = vmatprep.subr.mxu0 0.0
        %1464 = vmatpush1.msra.mxu0 0.0
        %1465 = vmatprep.subr.mxu0 0.0
        %1466 = vmatpush1.msra.mxu0 0.0
        %1467 = vmatprep.subr.mxu0 0.0
        %1468 = vmatpush1.msra.mxu0 0.0
        %1469 = vmatprep.subr.mxu0 0.0
        %1470 = vmatpush1.msra.mxu0 0.0
        %1471 = vmatprep.subr.mxu0 0.0
        %1472 = vmatpush1.msra.mxu0 0.0
        %1473 = vmatprep.subr.mxu0 0.0
        %1474 = vmatpush1.msra.mxu0 0.0
        %1475 = vmatprep.subr.mxu0 0.0
        %1476 = vmatpush1.msra.mxu0 0.0
        %1477 = vmatprep.subr.mxu0 0.0
        %1478 = vmatpush1.msra.mxu0 0.0
        %1479 = vmatprep.subr.mxu0 0.0
        %1480 = vmatpush1.msra.mxu0 0.0
        %1481 = vmatprep.subr.mxu0 0.0
        %1482 = vmatpush1.msra.mxu0 0.0
        %1483 = vmatprep.subr.mxu0 0.0
        %1484 = vmatpush1.msra.mxu0 0.0
        %1485 = vmatprep.subr.mxu0 0.0
        %1486 = vmatpush1.msra.mxu0 0.0
        %1487 = vmatprep.subr.mxu0 0.0
        %1488 = vmatpush1.msra.mxu0 0.0
        %1489 = vmatprep.subr.mxu0 0.0
        %1490 = vmatpush1.msra.mxu0 0.0
        %1491 = vmatprep.subr.mxu0 0.0
        %1492 = vmatpush1.msra.mxu0 0.0
        %1493 = vmatprep.subr.mxu0 0.0
        %1494 = vmatpush1.msra.mxu0 0.0
        %1495 = vmatprep.subr.mxu0 0.0
        %1496 = vmatpush1.msra.mxu0 0.0
        %1497 = vmatprep.subr.mxu0 0.0
        %1498 = vmatpush1.msra.mxu0 0.0
        %1499 = vmatprep.subr.mxu0 0.0
        %1500 = vmatpush1.msra.mxu0 0.0
        %1501 = vmatprep.subr.mxu0 0.0
        %1502 = vmatpush1.msra.mxu0 0.0
        %1503 = vmatprep.subr.mxu0 0.0
        %1504 = vmatpush1.msra.mxu0 0.0
        %1505 = vmatprep.subr.mxu0 0.0
        %1506 = vmatpush1.msra.mxu0 0.0
        %1507 = vmatprep.subr.mxu0 0.0
        %1508 = vmatpush1.msra.mxu0 0.0
        %1509 = vmatprep.subr.mxu0 0.0
        %1510 = vmatpush1.msra.mxu0 0.0
        %1511 = vmatprep.subr.mxu0 0.0
        %1512 = vmatpush1.msra.mxu0 0.0
        %1513 = vmatprep.subr.mxu0 0.0
        %1514 = vmatpush1.msra.mxu0 0.0
        %1515 = vmatprep.subr.mxu0 0.0
        %1516 = vmatpush1.msra.mxu0 0.0
        %1517 = vmatprep.subr.mxu0 0.0
        %1518 = vmatpush1.msra.mxu0 0.0
        %1519 = vmatprep.mubr.f32.mxu0 0.0
        %1520 = vmatmul.mubr.f32.gmra.mrb[0].mxu0 %v1453
        %v1521 = vpop.f32.mrb[0].mxu0
        %v1522 = vadd.f32 0.0, %v1521
        %v1523 = vpop.f32.mrb[0].mxu0
        %1524 = vdwg.mxu0
        %1526 = vrot.lane.b32.xlu0 %v1188, 8
        %v1527 = vpop.permute.xlu0 %1526
        %1530 = vrot.lane.b32.xlu0 %v1355, 16
        %v1531 = vpop.permute.xlu0 %1530
        %1534 = vrot.lane.b32.xlu0 %v1522, 24
        %v1535 = vpop.permute.xlu0 %1534
        %v1537 = vsel %vm773, %v1021, %v1527
        %vm1538 = vcmask 130048
        %v1539 = vsel %vm1538, %v1537, %v1531
        %vm1540 = vcmask 195584
        %v1541 = vsel %vm1540, %v1539, %v1535
        %s1542 = ssub.f32 1.0, %s671
        %v1543 = vstv %s1542
        %v1544 = vmul.f32 %v1543, %v1541
        %v1545 = vstv %s671
        %v1546 = vmul.f32 %v1545, %v859
        %v1547 = vadd.f32 %v1544, %v1546
        %v1548 = vld [vmem:[#allocation14] sm:$0xff]
        %v1549 = vld [vmem:[#allocation14 + $0x8] sm:$0xff]
        %v1550 = vld [vmem:[#allocation14 + $0x10] sm:$0xff]
        %v1551 = vld [vmem:[#allocation14 + $0x18] sm:$0xff]
        %v1552 = vld [vmem:[#allocation15] sm:$0x1]
        %v1554 = vlaneseq
        %v1555 = vshrl.u32 %v1554, 7
        %v1556 = vsub.s32 0, %v1555
        %v1557 = vrot.slane %v1552, %v1556
        %v1560 = vsel %vm686, %v1547, 0
        %1562 = vmatprep.subr.mxu0 0.0
        %1563 = vmatpush1.msra.mxu0 %v1548
        %1564 = vmatprep.subr.mxu0 0.0
        %1565 = vmatpush1.msra.mxu0 %v1549
        %1566 = vmatprep.subr.mxu0 0.0
        %1567 = vmatpush1.msra.mxu0 %v1550
        %1568 = vmatprep.subr.mxu0 0.0
        %1569 = vmatpush1.msra.mxu0 %v1551
        %1570 = vmatprep.subr.mxu0 0.0
        %1571 = vmatpush1.msra.mxu0 0.0
        %1572 = vmatprep.subr.mxu0 0.0
        %1573 = vmatpush1.msra.mxu0 0.0
        %1574 = vmatprep.subr.mxu0 0.0
        %1575 = vmatpush1.msra.mxu0 0.0
        %1576 = vmatprep.subr.mxu0 0.0
        %1577 = vmatpush1.msra.mxu0 0.0
        %1578 = vmatprep.subr.mxu0 0.0
        %1579 = vmatpush1.msra.mxu0 0.0
        %1580 = vmatprep.subr.mxu0 0.0
        %1581 = vmatpush1.msra.mxu0 0.0
        %1582 = vmatprep.subr.mxu0 0.0
        %1583 = vmatpush1.msra.mxu0 0.0
        %1584 = vmatprep.subr.mxu0 0.0
        %1585 = vmatpush1.msra.mxu0 0.0
        %1586 = vmatprep.subr.mxu0 0.0
        %1587 = vmatpush1.msra.mxu0 0.0
        %1588 = vmatprep.subr.mxu0 0.0
        %1589 = vmatpush1.msra.mxu0 0.0
        %1590 = vmatprep.subr.mxu0 0.0
        %1591 = vmatpush1.msra.mxu0 0.0
        %1592 = vmatprep.subr.mxu0 0.0
        %1593 = vmatpush1.msra.mxu0 0.0
        %1594 = vmatprep.subr.mxu0 0.0
        %1595 = vmatpush1.msra.mxu0 0.0
        %1596 = vmatprep.subr.mxu0 0.0
        %1597 = vmatpush1.msra.mxu0 0.0
        %1598 = vmatprep.subr.mxu0 0.0
        %1599 = vmatpush1.msra.mxu0 0.0
        %1600 = vmatprep.subr.mxu0 0.0
        %1601 = vmatpush1.msra.mxu0 0.0
        %1602 = vmatprep.subr.mxu0 0.0
        %1603 = vmatpush1.msra.mxu0 0.0
        %1604 = vmatprep.subr.mxu0 0.0
        %1605 = vmatpush1.msra.mxu0 0.0
        %1606 = vmatprep.subr.mxu0 0.0
        %1607 = vmatpush1.msra.mxu0 0.0
        %1608 = vmatprep.subr.mxu0 0.0
        %1609 = vmatpush1.msra.mxu0 0.0
        %1610 = vmatprep.subr.mxu0 0.0
        %1611 = vmatpush1.msra.mxu0 0.0
        %1612 = vmatprep.subr.mxu0 0.0
        %1613 = vmatpush1.msra.mxu0 0.0
        %1614 = vmatprep.subr.mxu0 0.0
        %1615 = vmatpush1.msra.mxu0 0.0
        %1616 = vmatprep.subr.mxu0 0.0
        %1617 = vmatpush1.msra.mxu0 0.0
        %1618 = vmatprep.subr.mxu0 0.0
        %1619 = vmatpush1.msra.mxu0 0.0
        %1620 = vmatprep.subr.mxu0 0.0
        %1621 = vmatpush1.msra.mxu0 0.0
        %1622 = vmatprep.subr.mxu0 0.0
        %1623 = vmatpush1.msra.mxu0 0.0
        %1624 = vmatprep.subr.mxu0 0.0
        %1625 = vmatpush1.msra.mxu0 0.0
        %1626 = vmatprep.mubr.f32.mxu0 0.0
        %1627 = vmatmul.mubr.f32.gmra.mrb[0].mxu0 %v1560
        %v1628 = vpop.f32.mrb[0].mxu0
        %v1629 = vadd.f32 %v1557, %v1628
        %v1630 = vpop.f32.mrb[0].mxu0
        %1631 = vdwg.mxu0
        %v1632 = vld [vmem:[#allocation17] sm:$0xff]
        %v1633 = vld [vmem:[#allocation17 + $0x8] sm:$0xff]
        %v1634 = vld [vmem:[#allocation17 + $0x10] sm:$0xff]
        %v1635 = vld [vmem:[#allocation17 + $0x18] sm:$0xff]
        %v1636 = vld [vmem:[#allocation18] sm:$0x1]
        %v1638 = vlaneseq
        %v1639 = vshrl.u32 %v1638, 7
        %v1640 = vsub.s32 0, %v1639
        %v1641 = vrot.slane %v1636, %v1640
        %v1644 = vsel %vm686, %v1629, 0
        %1646 = vmatprep.subr.mxu0 0.0
        %1647 = vmatpush1.msra.mxu0 %v1632
        %1648 = vmatprep.subr.mxu0 0.0
        %1649 = vmatpush1.msra.mxu0 %v1633
        %1650 = vmatprep.subr.mxu0 0.0
        %1651 = vmatpush1.msra.mxu0 %v1634
        %1652 = vmatprep.subr.mxu0 0.0
        %1653 = vmatpush1.msra.mxu0 %v1635
        %1654 = vmatprep.subr.mxu0 0.0
        %1655 = vmatpush1.msra.mxu0 0.0
        %1656 = vmatprep.subr.mxu0 0.0
        %1657 = vmatpush1.msra.mxu0 0.0
        %1658 = vmatprep.subr.mxu0 0.0
        %1659 = vmatpush1.msra.mxu0 0.0
        %1660 = vmatprep.subr.mxu0 0.0
        %1661 = vmatpush1.msra.mxu0 0.0
        %1662 = vmatprep.subr.mxu0 0.0
        %1663 = vmatpush1.msra.mxu0 0.0
        %1664 = vmatprep.subr.mxu0 0.0
        %1665 = vmatpush1.msra.mxu0 0.0
        %1666 = vmatprep.subr.mxu0 0.0
        %1667 = vmatpush1.msra.mxu0 0.0
        %1668 = vmatprep.subr.mxu0 0.0
        %1669 = vmatpush1.msra.mxu0 0.0
        %1670 = vmatprep.subr.mxu0 0.0
        %1671 = vmatpush1.msra.mxu0 0.0
        %1672 = vmatprep.subr.mxu0 0.0
        %1673 = vmatpush1.msra.mxu0 0.0
        %1674 = vmatprep.subr.mxu0 0.0
        %1675 = vmatpush1.msra.mxu0 0.0
        %1676 = vmatprep.subr.mxu0 0.0
        %1677 = vmatpush1.msra.mxu0 0.0
        %1678 = vmatprep.subr.mxu0 0.0
        %1679 = vmatpush1.msra.mxu0 0.0
        %1680 = vmatprep.subr.mxu0 0.0
        %1681 = vmatpush1.msra.mxu0 0.0
        %1682 = vmatprep.subr.mxu0 0.0
        %1683 = vmatpush1.msra.mxu0 0.0
        %1684 = vmatprep.subr.mxu0 0.0
        %1685 = vmatpush1.msra.mxu0 0.0
        %1686 = vmatprep.subr.mxu0 0.0
        %1687 = vmatpush1.msra.mxu0 0.0
        %1688 = vmatprep.subr.mxu0 0.0
        %1689 = vmatpush1.msra.mxu0 0.0
        %1690 = vmatprep.subr.mxu0 0.0
        %1691 = vmatpush1.msra.mxu0 0.0
        %1692 = vmatprep.subr.mxu0 0.0
        %1693 = vmatpush1.msra.mxu0 0.0
        %1694 = vmatprep.subr.mxu0 0.0
        %1695 = vmatpush1.msra.mxu0 0.0
        %1696 = vmatprep.subr.mxu0 0.0
        %1697 = vmatpush1.msra.mxu0 0.0
        %1698 = vmatprep.subr.mxu0 0.0
        %1699 = vmatpush1.msra.mxu0 0.0
        %1700 = vmatprep.subr.mxu0 0.0
        %1701 = vmatpush1.msra.mxu0 0.0
        %1702 = vmatprep.subr.mxu0 0.0
        %1703 = vmatpush1.msra.mxu0 0.0
        %1704 = vmatprep.subr.mxu0 0.0
        %1705 = vmatpush1.msra.mxu0 0.0
        %1706 = vmatprep.subr.mxu0 0.0
        %1707 = vmatpush1.msra.mxu0 0.0
        %1708 = vmatprep.subr.mxu0 0.0
        %1709 = vmatpush1.msra.mxu0 0.0
        %1710 = vmatprep.mubr.f32.mxu0 0.0
        %1711 = vmatmul.mubr.f32.gmra.mrb[0].mxu0 %v1644
        %v1712 = vpop.f32.mrb[0].mxu0
        %v1713 = vadd.f32 %v1641, %v1712
        %v1714 = vpop.f32.mrb[0].mxu0
        %1715 = vdwg.mxu0
        %v1716 = vadd.f32 %v1629, %v1713
        %v1717 = vsel %vm686, %v1716, 0.0
        %1718 = vadd.xlane.f32.xlu0 %v1717
        %v1719 = vpop.xlane.xlu0 %1718
        %v1720 = vrcp.pop 32.0
        %v1721 = vmul.f32 %v1719, %v1720
        %v1722 = vsub.f32 %v1716, %v1721
        %v1723 = vmul.f32 %v1722, %v1722
        %v1724 = vsel %vm686, %v1723, 0.0
        %1725 = vadd.xlane.f32.xlu0 %v1724
        %v1726 = vpop.xlane.xlu0 %1725
        %v1727 = vmul.f32 %v1726, %v1720
        %v1728 = vadd.f32 %v1727, 1e-05
        %v1729 = vrsqrt.pop %v1728
        %v1730 = vmul.f32 %v1722, %v1729
        %v1731 = vld [vmem:[#allocation20] sm:$0x1]
        %v1733 = vlaneseq
        %v1734 = vshrl.u32 %v1733, 7
        %v1735 = vsub.s32 0, %v1734
        %v1736 = vrot.slane %v1731, %v1735
        %v1738 = vmul.f32 %v1730, %v1736
        %v1739 = vld [vmem:[#allocation21] sm:$0x1]
        %v1741 = vlaneseq
        %v1742 = vshrl.u32 %v1741, 7
        %v1743 = vsub.s32 0, %v1742
        %v1744 = vrot.slane %v1739, %v1743
        %v1746 = vadd.f32 %v1738, %v1744
        %1747 = vst.msk [vmem:[%s670] sm:$0xff] %vm686, %v1746
        %s1748 = sand.u32 %s342, 1
        %s1749 = scalar_lea.sflag [#allocation5], %s1748
        %s1750 = sand.u32 %s342, 1
        %s1751 = smul.addr %s1750, 8
        %s1752 = scalar_lea.vmem [#allocation23], %s1751
        // Predicated region
        $region121: #{tpu_custom_call.1} parent=71 // pred_check
          %p1753 = pneg %p352
        $region122: #{tpu_custom_call.1} parent=71 // pred_check_branch
          %1755 = sbr.rel (%p1753) target = $region124
        $region123: #{tpu_custom_call.1} parent=71 // pred_region
          %s1757 = ssub.s32 128, 128
          %1758 = vsyncadd %s1749, %s1757
          %s1759 = smul.addr %s41, 128
          %s1760 = scalar_lea.hbm %s13, %s1759
          %s1762 = sshll.u32 %s1752, 4
          %s1763 = int_to_ptr.vmem [resolvable:$true] %s1762
          %1765 = dma.vmem_to_hbm [thread:$0]  %s1763, 128, %s1760, %s1749
        $region124: #{tpu_custom_call.1} parent=71 // pred_fallthru
          _
      $region72: #{tpu_custom_call.1} parent=5 // pred_fallthru
        _
      %p1766 = scmp.le.s32.totalorder 2, %s36
      // Predicated region
      $region125: #{tpu_custom_call.1} parent=5 // pred_check
        %p1767 = pneg %p1766
      $region126: #{tpu_custom_call.1} parent=5 // pred_check_branch
        %1769 = sbr.rel (%p1767) target = $region128
      $region127: #{tpu_custom_call.1} parent=5 // pred_region
        %s1770 = ssub.s32 %s36, 2
        // Predicated region
        $region129: #{tpu_custom_call.1} parent=127 // pred_check
          %p1771 = pneg %p358
        $region130: #{tpu_custom_call.1} parent=127 // pred_check_branch
          %1773 = sbr.rel (%p1771) target = $region132
        $region131: #{tpu_custom_call.1} parent=127 // pred_region
          %s1774 = sand.u32 %s343, 1
          %s1775 = scalar_lea.sflag [#allocation5], %s1774
          %s1776 = sand.u32 %s343, 1
          %s1777 = smul.addr %s1776, 8
          %s1778 = scalar_lea.vmem [#allocation23], %s1777
          %1779 = dma.done %s1775, 128
        $region132: #{tpu_custom_call.1} parent=127 // pred_fallthru
          _
      $region128: #{tpu_custom_call.1} parent=5 // pred_fallthru
        _
    $region6: #{tpu_custom_call.1} parent=1 // loop_footer
      %s40 = sadd.s32 1, %s36
    $region7: #{tpu_custom_call.1} parent=1 // loop_footer_branch
      %35 = sbr.rel target = $region3
    $region8: #{tpu_custom_call.1} parent=1 // loop_exit
      _
    %1780 = vsyncpa [#allocation4], 1
    %s1781 = scalar_lea.sflag [#allocation4], 1
    %1782 = vsyncpa %s1781, 1
    %1783 = vsyncpa [#allocation7], 1
    %s1784 = scalar_lea.sflag [#allocation7], 1
    %1785 = vsyncpa %s1784, 1
    %1786 = vsyncpa [#allocation10], 1
    %s1787 = scalar_lea.sflag [#allocation10], 1
    %1788 = vsyncpa %s1787, 1
    %1789 = vsyncpa [#allocation13], 1
    %1790 = vsyncpa [#allocation16], 1
    %1791 = vsyncpa [#allocation19], 1
    %1792 = vsyncpa [#allocation22], 1
    %1793 = vsyncpa [#allocation5], 1
    %s1794 = scalar_lea.sflag [#allocation5], 1
    %1795 = vsyncpa %s1794, 1

</llo_original>
